<compile_context>
chip_gen: v7x
topology: tpu7x:2x2x1
jax: 0.10.0
libtpu: 0.0.40
codegen_flags: <defaults>
</compile_context>

<pallas_src>
import functools
import math

import jax
import jax.numpy as jnp
from jax.experimental import pallas as pl
from jax.experimental.pallas import tpu as pltpu

LN_EPS = 1e-5  # torch.nn.LayerNorm default


# ----------------------------- in-kernel helpers -----------------------------

def _erf(x):
    # Abramowitz & Stegun 7.1.26 (|abs err| < 1.5e-7 ~ f32 eps); Mosaic has no
    # guaranteed erf primitive.  exp() lands on the EUP slot.
    a1, a2, a3, a4, a5 = (0.254829592, -0.284496736, 1.421413741,
                          -1.453152027, 1.061405429)
    p = 0.3275911
    ax = jnp.abs(x)
    t = 1.0 / (1.0 + p * ax)
    poly = ((((a5 * t + a4) * t + a3) * t + a2) * t + a1) * t
    y = 1.0 - poly * jnp.exp(-ax * ax)
    return jnp.where(x >= 0.0, y, -y)


def _gelu(x):
    # torch.nn.GELU() default = exact (erf-based) GELU
    return 0.5 * x * (1.0 + _erf(x * (1.0 / math.sqrt(2.0))))


def _layernorm(x, g, b):
    mu = jnp.mean(x, axis=-1, keepdims=True)
    xc = x - mu
    var = jnp.mean(xc * xc, axis=-1, keepdims=True)  # biased var, as torch LN
    return xc * jax.lax.rsqrt(var + LN_EPS) * g + b


def _linear(x, w, b):
    return jnp.dot(x, w, preferred_element_type=jnp.float32) + b


# --------------------------------- kernel ------------------------------------

def attention_block_kernel(n_heads,
                           x_ref,
                           ln1_g, ln1_b, w_qkv, b_qkv, w_o, b_o,
                           ln2_g, ln2_b, w_f1, b_f1, w_f2, b_f2,
                           out_ref):
    Bb, S, E = x_ref.shape
    hd = E // n_heads
    scale = 1.0 / math.sqrt(hd)

    x2 = x_ref[...].reshape(Bb * S, E)                 # rows = (batch, seq)

    # x = self.norm(x)
    xn2 = _layernorm(x2, ln1_g[...], ln1_b[...])

    # ---- MultiheadAttention ----
    # One fused qkv matmul [Bb*S, 3E]; columns are [Q | K | V], each head-major.
    qkv = _linear(xn2, w_qkv[...], b_qkv[...])
    q2 = qkv[:, 0 * E:1 * E]
    k2 = qkv[:, 1 * E:2 * E]
    v2 = qkv[:, 2 * E:3 * E]

    head_outs = []
    for h in range(n_heads):
        sl = slice(h * hd, (h + 1) * hd)
        qh = q2[:, sl].reshape(Bb, S, hd)
        kh = k2[:, sl].reshape(Bb, S, hd)
        vh = v2[:, sl].reshape(Bb, S, hd)
        # scaled dot-product attention over the sequence axis
        logits = jnp.einsum('bsd,btd->bst', qh, kh,
                            preferred_element_type=jnp.float32) * scale
        logits = logits - jnp.max(logits, axis=-1, keepdims=True)
        e = jnp.exp(logits)
        attn = e / jnp.sum(e, axis=-1, keepdims=True)
        vals = jnp.einsum('bst,btd->bsd', attn, vh,
                          preferred_element_type=jnp.float32)
        head_outs.append(vals.reshape(Bb * S, hd))
    values = head_outs[0] if n_heads == 1 else jnp.concatenate(head_outs, axis=-1)
    attn_out = _linear(values, w_o[...], b_o[...])

    # x = self.attention(x) + x    (x here is the normed input)
    h2 = attn_out + xn2

    # ---- FeedForward: LN -> Linear -> GELU -> Linear -> GELU, + residual ----
    fn = _layernorm(h2, ln2_g[...], ln2_b[...])
    f = _gelu(_linear(fn, w_f1[...], b_f1[...]))
    f = _gelu(_linear(f, w_f2[...], b_f2[...]))

    out_ref[...] = (f + h2).reshape(Bb, S, E).astype(out_ref.dtype)


# --------------------------------- wrapper -----------------------------------

_WEIGHT_NAMES = ("ln1_g", "ln1_b", "w_qkv", "b_qkv", "w_o", "b_o",
                 "ln2_g", "ln2_b", "w_f1", "b_f1", "w_f2", "b_f2")


def attention_block(x, params, *, n_heads, block_b=None):
    B, S, E = x.shape
    assert E % n_heads == 0

    if block_b is None:
        block_b = min(B, 256)                      # activation tile well within VMEM
        if B > 1:
            # ensure >= 2 grid steps so v7x's 2 TensorCores both get work
            block_b = min(block_b, pl.cdiv(B, 2))
    grid = (pl.cdiv(B, block_b),)

    weights = [params[n] for n in _WEIGHT_NAMES]

    in_specs = [pl.BlockSpec((block_b, S, E), lambda i: (i, 0, 0))]
    in_specs += [pl.BlockSpec(w.shape, lambda i, nd=w.ndim: (0,) * nd)
                 for w in weights]                 # broadcast weights
    out_specs = pl.BlockSpec((block_b, S, E), lambda i: (i, 0, 0))
    out_shape = jax.ShapeDtypeStruct((B, S, E), x.dtype)

    kernel = functools.partial(attention_block_kernel, n_heads)
    return pl.pallas_call(
        kernel,
        grid=grid,
        in_specs=in_specs,
        out_specs=out_specs,
        out_shape=out_shape,
        compiler_params=pltpu.CompilerParams(
            dimension_semantics=("parallel",),
            vmem_limit_bytes=32 * 1024 * 1024,     # safe on v5e/v6e/v7x
        ),
    )(x, *weights)


# ------------------------- deterministic parameter init ----------------------

def init_params(key, embed_dim, n_heads):
    E, hd = embed_dim, embed_dim // n_heads
    f32 = jnp.float32

    def torch_linear(k, fan_in, fan_out):
        kw, kb = jax.random.split(k)
        bound = 1.0 / math.sqrt(fan_in)
        w = jax.random.uniform(kw, (fan_in, fan_out), f32, -bound, bound)
        b = jax.random.uniform(kb, (1, fan_out), f32, -bound, bound)
        return w, b

    def xavier(k, fan_in, fan_out):
        bound = math.sqrt(6.0 / (fan_in + fan_out))
        w = jax.random.uniform(k, (fan_in, fan_out), f32, -bound, bound)
        return w, jnp.zeros((1, fan_out), f32)     # bias zeroed as in the module

    k_qkv, k_o, k_f1, k_f2 = jax.random.split(key, 4)

    ln1_g, ln1_b = jnp.ones((1, E), f32), jnp.zeros((1, E), f32)

    # qkv_proj: xavier [E, 3E] (stored transposed: y = x @ W).  Torch interprets
    # the 3E axis as (head, {q,k,v}, hd); reorder columns to ({q,k,v}, head, hd)
    # so the kernel takes contiguous Q/K/V slabs and contiguous per-head slices.
    w_qkv, b_qkv = xavier(k_qkv, E, 3 * E)
    w_qkv = w_qkv.reshape(E, n_heads, 3, hd).transpose(0, 2, 1, 3).reshape(E, 3 * E)
    b_qkv = b_qkv.reshape(1, n_heads, 3, hd).transpose(0, 2, 1, 3).reshape(1, 3 * E)

    w_o, b_o = xavier(k_o, E, E)

    ln2_g, ln2_b = jnp.ones((1, E), f32), jnp.zeros((1, E), f32)
    w_f1, b_f1 = torch_linear(k_f1, E, E)
    w_f2, b_f2 = torch_linear(k_f2, E, E)

    return dict(ln1_g=ln1_g, ln1_b=ln1_b, w_qkv=w_qkv, b_qkv=b_qkv,
                w_o=w_o, b_o=b_o, ln2_g=ln2_g, ln2_b=ln2_b,
                w_f1=w_f1, b_f1=b_f1, w_f2=w_f2, b_f2=b_f2)


# ---------------------------- pure-JAX reference ------------------------------

def attention_block_ref(x, p, *, n_heads):
    B, S, E = x.shape
    hd = E // n_heads
    x2 = x.reshape(B * S, E)
    xn = _layernorm(x2, p["ln1_g"], p["ln1_b"])
    qkv = xn @ p["w_qkv"] + p["b_qkv"]
    q = qkv[:, :E].reshape(B, S, n_heads, hd).transpose(0, 2, 1, 3)
    k = qkv[:, E:2 * E].reshape(B, S, n_heads, hd).transpose(0, 2, 1, 3)
    v = qkv[:, 2 * E:].reshape(B, S, n_heads, hd).transpose(0, 2, 1, 3)
    logits = jnp.einsum('bhsd,bhtd->bhst', q, k) / math.sqrt(hd)
    attn = jax.nn.softmax(logits, axis=-1)
    vals = jnp.einsum('bhst,bhtd->bhsd', attn, v)
    vals = vals.transpose(0, 2, 1, 3).reshape(B * S, E)
    h = vals @ p["w_o"] + p["b_o"] + xn
    fn = _layernorm(h, p["ln2_g"], p["ln2_b"])
    f = _gelu(fn @ p["w_f1"] + p["b_f1"])
    f = _gelu(f @ p["w_f2"] + p["b_f2"])
    return (f + h).reshape(B, S, E)


# ----------------------------------- main -------------------------------------

if __name__ == "__main__":
    B, S, E = 2, 8, 32
    N_HEADS = 2

    key = jax.random.PRNGKey(0)
    kx, kp = jax.random.split(key)
    x = jax.random.normal(kx, (B, S, E), jnp.float32)
    params = init_params(kp, E, N_HEADS)

    out = attention_block(x, params, n_heads=N_HEADS)
    jax.block_until_ready(out)
    assert out.shape == (B, S, E) and out.dtype == jnp.float32

    ref = attention_block_ref(x, params, n_heads=N_HEADS)
    assert jnp.allclose(out, ref, atol=2e-3, rtol=2e-3), \
        float(jnp.max(jnp.abs(out - ref)))

    print("KERNEL_OK")
</pallas_src>

<mosaic_0001>
module attributes {stable_mosaic.version = 11 : i64} {
  func.func @attention_block_kernel(%arg0: i32, %arg1: memref<1x8x32xf32, #tpu.memory_space<vmem>>, %arg2: memref<1x32xf32, #tpu.memory_space<vmem>>, %arg3: memref<1x32xf32, #tpu.memory_space<vmem>>, %arg4: memref<32x96xf32, #tpu.memory_space<vmem>>, %arg5: memref<1x96xf32, #tpu.memory_space<vmem>>, %arg6: memref<32x32xf32, #tpu.memory_space<vmem>>, %arg7: memref<1x32xf32, #tpu.memory_space<vmem>>, %arg8: memref<1x32xf32, #tpu.memory_space<vmem>>, %arg9: memref<1x32xf32, #tpu.memory_space<vmem>>, %arg10: memref<32x32xf32, #tpu.memory_space<vmem>>, %arg11: memref<1x32xf32, #tpu.memory_space<vmem>>, %arg12: memref<32x32xf32, #tpu.memory_space<vmem>>, %arg13: memref<1x32xf32, #tpu.memory_space<vmem>>, %arg14: memref<1x8x32xf32, #tpu.memory_space<vmem>>) attributes {dimension_semantics = [#tpu.dimension_semantics<parallel>], iteration_bounds = array<i64: 2>, scalar_prefetch = 0 : i64, scratch_operands = 0 : i64, tpu.core_type = #tpu.core_type<tc>, window_params = [{transform_indices = @transform_0, window_bounds = array<i64: 1, 8, 32>}, {pipeline_mode = #tpu.pipeline_mode<synchronous>, transform_indices = @transform_1, window_bounds = array<i64: 1, 32>}, {pipeline_mode = #tpu.pipeline_mode<synchronous>, transform_indices = @transform_2, window_bounds = array<i64: 1, 32>}, {pipeline_mode = #tpu.pipeline_mode<synchronous>, transform_indices = @transform_3, window_bounds = array<i64: 32, 96>}, {pipeline_mode = #tpu.pipeline_mode<synchronous>, transform_indices = @transform_4, window_bounds = array<i64: 1, 96>}, {pipeline_mode = #tpu.pipeline_mode<synchronous>, transform_indices = @transform_5, window_bounds = array<i64: 32, 32>}, {pipeline_mode = #tpu.pipeline_mode<synchronous>, transform_indices = @transform_6, window_bounds = array<i64: 1, 32>}, {pipeline_mode = #tpu.pipeline_mode<synchronous>, transform_indices = @transform_7, window_bounds = array<i64: 1, 32>}, {pipeline_mode = #tpu.pipeline_mode<synchronous>, transform_indices = @transform_8, window_bounds = array<i64: 1, 32>}, {pipeline_mode = #tpu.pipeline_mode<synchronous>, transform_indices = @transform_9, window_bounds = array<i64: 32, 32>}, {pipeline_mode = #tpu.pipeline_mode<synchronous>, transform_indices = @transform_10, window_bounds = array<i64: 1, 32>}, {pipeline_mode = #tpu.pipeline_mode<synchronous>, transform_indices = @transform_11, window_bounds = array<i64: 32, 32>}, {pipeline_mode = #tpu.pipeline_mode<synchronous>, transform_indices = @transform_12, window_bounds = array<i64: 1, 32>}, {transform_indices = @transform_13, window_bounds = array<i64: 1, 8, 32>}]} {
    %c0 = arith.constant 0 : index
    %c0_0 = arith.constant 0 : index
    %c0_1 = arith.constant 0 : index
    %0 = vector.load %arg1[%c0, %c0_0, %c0_1] : memref<1x8x32xf32, #tpu.memory_space<vmem>>, vector<1x8x32xf32>
    %1 = vector.shape_cast %0 : vector<1x8x32xf32> to vector<8x32xf32>
    %c0_2 = arith.constant 0 : index
    %c0_3 = arith.constant 0 : index
    %2 = vector.load %arg2[%c0_2, %c0_3] : memref<1x32xf32, #tpu.memory_space<vmem>>, vector<1x32xf32>
    %c0_4 = arith.constant 0 : index
    %c0_5 = arith.constant 0 : index
    %3 = vector.load %arg3[%c0_4, %c0_5] : memref<1x32xf32, #tpu.memory_space<vmem>>, vector<1x32xf32>
    %cst = arith.constant dense<0.000000e+00> : vector<8xf32>
    %4 = vector.multi_reduction <add>, %1, %cst [1] : vector<8x32xf32> to vector<8xf32>
    %5 = vector.shape_cast %4 : vector<8xf32> to vector<8x1xf32>
    %cst_6 = arith.constant 3.200000e+01 : f32
    %6 = vector.broadcast %cst_6 : f32 to vector<8x1xf32>
    %7 = arith.divf %5, %6 : vector<8x1xf32>
    %8 = vector.broadcast %7 : vector<8x1xf32> to vector<8x32xf32>
    %9 = arith.subf %1, %8 : vector<8x32xf32>
    %10 = arith.mulf %9, %9 : vector<8x32xf32>
    %cst_7 = arith.constant dense<0.000000e+00> : vector<8xf32>
    %11 = vector.multi_reduction <add>, %10, %cst_7 [1] : vector<8x32xf32> to vector<8xf32>
    %12 = vector.shape_cast %11 : vector<8xf32> to vector<8x1xf32>
    %cst_8 = arith.constant 3.200000e+01 : f32
    %13 = vector.broadcast %cst_8 : f32 to vector<8x1xf32>
    %14 = arith.divf %12, %13 : vector<8x1xf32>
    %cst_9 = arith.constant 9.99999974E-6 : f32
    %15 = vector.broadcast %cst_9 : f32 to vector<8x1xf32>
    %16 = arith.addf %14, %15 : vector<8x1xf32>
    %17 = math.rsqrt %16 : vector<8x1xf32>
    %18 = vector.broadcast %17 : vector<8x1xf32> to vector<8x32xf32>
    %19 = arith.mulf %9, %18 : vector<8x32xf32>
    %20 = vector.broadcast %2 : vector<1x32xf32> to vector<8x32xf32>
    %21 = arith.mulf %19, %20 : vector<8x32xf32>
    %22 = vector.broadcast %3 : vector<1x32xf32> to vector<8x32xf32>
    %23 = arith.addf %21, %22 : vector<8x32xf32>
    %c0_10 = arith.constant 0 : index
    %c0_11 = arith.constant 0 : index
    %24 = vector.load %arg4[%c0_10, %c0_11] : memref<32x96xf32, #tpu.memory_space<vmem>>, vector<32x96xf32>
    %c0_12 = arith.constant 0 : index
    %c0_13 = arith.constant 0 : index
    %25 = vector.load %arg5[%c0_12, %c0_13] : memref<1x96xf32, #tpu.memory_space<vmem>>, vector<1x96xf32>
    %cst_14 = arith.constant dense<0.000000e+00> : vector<8x96xf32>
    %26 = tpu.matmul %23, %24, %cst_14 {dimension_numbers = #tpu.dot_dimension_numbers<[1], [0], [0], [1], [0, 0, 1, 1], [], []>} : vector<8x32xf32>, vector<32x96xf32>, vector<8x96xf32> -> vector<8x96xf32>
    %27 = vector.broadcast %25 : vector<1x96xf32> to vector<8x96xf32>
    %28 = arith.addf %26, %27 : vector<8x96xf32>
    %29 = vector.extract_strided_slice %28 {offsets = [0, 0], sizes = [8, 32], strides = [1, 1]} : vector<8x96xf32> to vector<8x32xf32>
    %30 = vector.extract_strided_slice %28 {offsets = [0, 32], sizes = [8, 32], strides = [1, 1]} : vector<8x96xf32> to vector<8x32xf32>
    %31 = vector.extract_strided_slice %28 {offsets = [0, 64], sizes = [8, 32], strides = [1, 1]} : vector<8x96xf32> to vector<8x32xf32>
    %32 = vector.extract_strided_slice %29 {offsets = [0, 0], sizes = [8, 16], strides = [1, 1]} : vector<8x32xf32> to vector<8x16xf32>
    %33 = vector.shape_cast %32 : vector<8x16xf32> to vector<1x8x16xf32>
    %34 = vector.extract_strided_slice %30 {offsets = [0, 0], sizes = [8, 16], strides = [1, 1]} : vector<8x32xf32> to vector<8x16xf32>
    %35 = vector.shape_cast %34 : vector<8x16xf32> to vector<1x8x16xf32>
    %36 = vector.extract_strided_slice %31 {offsets = [0, 0], sizes = [8, 16], strides = [1, 1]} : vector<8x32xf32> to vector<8x16xf32>
    %37 = vector.shape_cast %36 : vector<8x16xf32> to vector<1x8x16xf32>
    "tpu.trace_start"() <{level = 10 : i32, message = "bsd,btd->bst"}> : () -> ()
    %cst_15 = arith.constant dense<0.000000e+00> : vector<1x8x8xf32>
    %38 = tpu.matmul %33, %35, %cst_15 {dimension_numbers = #tpu.dot_dimension_numbers<[2], [2], [1], [1], [0, 0, 0, 1, 1, 1], [0], [0]>} : vector<1x8x16xf32>, vector<1x8x16xf32>, vector<1x8x8xf32> -> vector<1x8x8xf32>
    "tpu.trace_stop"() : () -> ()
    %cst_16 = arith.constant 2.500000e-01 : f32
    %39 = vector.broadcast %cst_16 : f32 to vector<1x8x8xf32>
    %40 = arith.mulf %38, %39 : vector<1x8x8xf32>
    %cst_17 = arith.constant dense<0xFF800000> : vector<1x8xf32>
    %41 = vector.multi_reduction <maximumf>, %40, %cst_17 [2] : vector<1x8x8xf32> to vector<1x8xf32>
    %42 = vector.shape_cast %41 : vector<1x8xf32> to vector<1x8x1xf32>
    %43 = vector.broadcast %42 : vector<1x8x1xf32> to vector<1x8x8xf32>
    %44 = arith.subf %40, %43 : vector<1x8x8xf32>
    %45 = math.exp %44 : vector<1x8x8xf32>
    %cst_18 = arith.constant dense<0.000000e+00> : vector<1x8xf32>
    %46 = vector.multi_reduction <add>, %45, %cst_18 [2] : vector<1x8x8xf32> to vector<1x8xf32>
    %47 = vector.shape_cast %46 : vector<1x8xf32> to vector<1x8x1xf32>
    %48 = vector.broadcast %47 : vector<1x8x1xf32> to vector<1x8x8xf32>
    %49 = arith.divf %45, %48 : vector<1x8x8xf32>
    "tpu.trace_start"() <{level = 10 : i32, message = "bst,btd->bsd"}> : () -> ()
    %cst_19 = arith.constant dense<0.000000e+00> : vector<1x8x16xf32>
    %50 = tpu.matmul %49, %37, %cst_19 {dimension_numbers = #tpu.dot_dimension_numbers<[2], [1], [1], [2], [0, 0, 0, 1, 1, 2], [0], [0]>} : vector<1x8x8xf32>, vector<1x8x16xf32>, vector<1x8x16xf32> -> vector<1x8x16xf32>
    "tpu.trace_stop"() : () -> ()
    %51 = vector.shape_cast %50 : vector<1x8x16xf32> to vector<8x16xf32>
    %52 = vector.extract_strided_slice %29 {offsets = [0, 16], sizes = [8, 16], strides = [1, 1]} : vector<8x32xf32> to vector<8x16xf32>
    %53 = vector.shape_cast %52 : vector<8x16xf32> to vector<1x8x16xf32>
    %54 = vector.extract_strided_slice %30 {offsets = [0, 16], sizes = [8, 16], strides = [1, 1]} : vector<8x32xf32> to vector<8x16xf32>
    %55 = vector.shape_cast %54 : vector<8x16xf32> to vector<1x8x16xf32>
    %56 = vector.extract_strided_slice %31 {offsets = [0, 16], sizes = [8, 16], strides = [1, 1]} : vector<8x32xf32> to vector<8x16xf32>
    %57 = vector.shape_cast %56 : vector<8x16xf32> to vector<1x8x16xf32>
    "tpu.trace_start"() <{level = 10 : i32, message = "bsd,btd->bst"}> : () -> ()
    %cst_20 = arith.constant dense<0.000000e+00> : vector<1x8x8xf32>
    %58 = tpu.matmul %53, %55, %cst_20 {dimension_numbers = #tpu.dot_dimension_numbers<[2], [2], [1], [1], [0, 0, 0, 1, 1, 1], [0], [0]>} : vector<1x8x16xf32>, vector<1x8x16xf32>, vector<1x8x8xf32> -> vector<1x8x8xf32>
    "tpu.trace_stop"() : () -> ()
    %cst_21 = arith.constant 2.500000e-01 : f32
    %59 = vector.broadcast %cst_21 : f32 to vector<1x8x8xf32>
    %60 = arith.mulf %58, %59 : vector<1x8x8xf32>
    %cst_22 = arith.constant dense<0xFF800000> : vector<1x8xf32>
    %61 = vector.multi_reduction <maximumf>, %60, %cst_22 [2] : vector<1x8x8xf32> to vector<1x8xf32>
    %62 = vector.shape_cast %61 : vector<1x8xf32> to vector<1x8x1xf32>
    %63 = vector.broadcast %62 : vector<1x8x1xf32> to vector<1x8x8xf32>
    %64 = arith.subf %60, %63 : vector<1x8x8xf32>
    %65 = math.exp %64 : vector<1x8x8xf32>
    %cst_23 = arith.constant dense<0.000000e+00> : vector<1x8xf32>
    %66 = vector.multi_reduction <add>, %65, %cst_23 [2] : vector<1x8x8xf32> to vector<1x8xf32>
    %67 = vector.shape_cast %66 : vector<1x8xf32> to vector<1x8x1xf32>
    %68 = vector.broadcast %67 : vector<1x8x1xf32> to vector<1x8x8xf32>
    %69 = arith.divf %65, %68 : vector<1x8x8xf32>
    "tpu.trace_start"() <{level = 10 : i32, message = "bst,btd->bsd"}> : () -> ()
    %cst_24 = arith.constant dense<0.000000e+00> : vector<1x8x16xf32>
    %70 = tpu.matmul %69, %57, %cst_24 {dimension_numbers = #tpu.dot_dimension_numbers<[2], [1], [1], [2], [0, 0, 0, 1, 1, 2], [0], [0]>} : vector<1x8x8xf32>, vector<1x8x16xf32>, vector<1x8x16xf32> -> vector<1x8x16xf32>
    "tpu.trace_stop"() : () -> ()
    %71 = vector.shape_cast %70 : vector<1x8x16xf32> to vector<8x16xf32>
    %72 = tpu.concatenate %51, %71 in 1 : vector<8x16xf32>, vector<8x16xf32> -> vector<8x32xf32>
    %c0_25 = arith.constant 0 : index
    %c0_26 = arith.constant 0 : index
    %73 = vector.load %arg6[%c0_25, %c0_26] : memref<32x32xf32, #tpu.memory_space<vmem>>, vector<32x32xf32>
    %c0_27 = arith.constant 0 : index
    %c0_28 = arith.constant 0 : index
    %74 = vector.load %arg7[%c0_27, %c0_28] : memref<1x32xf32, #tpu.memory_space<vmem>>, vector<1x32xf32>
    %cst_29 = arith.constant dense<0.000000e+00> : vector<8x32xf32>
    %75 = tpu.matmul %72, %73, %cst_29 {dimension_numbers = #tpu.dot_dimension_numbers<[1], [0], [0], [1], [0, 0, 1, 1], [], []>} : vector<8x32xf32>, vector<32x32xf32>, vector<8x32xf32> -> vector<8x32xf32>
    %76 = vector.broadcast %74 : vector<1x32xf32> to vector<8x32xf32>
    %77 = arith.addf %75, %76 : vector<8x32xf32>
    %78 = arith.addf %77, %23 : vector<8x32xf32>
    %c0_30 = arith.constant 0 : index
    %c0_31 = arith.constant 0 : index
    %79 = vector.load %arg8[%c0_30, %c0_31] : memref<1x32xf32, #tpu.memory_space<vmem>>, vector<1x32xf32>
    %c0_32 = arith.constant 0 : index
    %c0_33 = arith.constant 0 : index
    %80 = vector.load %arg9[%c0_32, %c0_33] : memref<1x32xf32, #tpu.memory_space<vmem>>, vector<1x32xf32>
    %cst_34 = arith.constant dense<0.000000e+00> : vector<8xf32>
    %81 = vector.multi_reduction <add>, %78, %cst_34 [1] : vector<8x32xf32> to vector<8xf32>
    %82 = vector.shape_cast %81 : vector<8xf32> to vector<8x1xf32>
    %cst_35 = arith.constant 3.200000e+01 : f32
    %83 = vector.broadcast %cst_35 : f32 to vector<8x1xf32>
    %84 = arith.divf %82, %83 : vector<8x1xf32>
    %85 = vector.broadcast %84 : vector<8x1xf32> to vector<8x32xf32>
    %86 = arith.subf %78, %85 : vector<8x32xf32>
    %87 = arith.mulf %86, %86 : vector<8x32xf32>
    %cst_36 = arith.constant dense<0.000000e+00> : vector<8xf32>
    %88 = vector.multi_reduction <add>, %87, %cst_36 [1] : vector<8x32xf32> to vector<8xf32>
    %89 = vector.shape_cast %88 : vector<8xf32> to vector<8x1xf32>
    %cst_37 = arith.constant 3.200000e+01 : f32
    %90 = vector.broadcast %cst_37 : f32 to vector<8x1xf32>
    %91 = arith.divf %89, %90 : vector<8x1xf32>
    %cst_38 = arith.constant 9.99999974E-6 : f32
    %92 = vector.broadcast %cst_38 : f32 to vector<8x1xf32>
    %93 = arith.addf %91, %92 : vector<8x1xf32>
    %94 = math.rsqrt %93 : vector<8x1xf32>
    %95 = vector.broadcast %94 : vector<8x1xf32> to vector<8x32xf32>
    %96 = arith.mulf %86, %95 : vector<8x32xf32>
    %97 = vector.broadcast %79 : vector<1x32xf32> to vector<8x32xf32>
    %98 = arith.mulf %96, %97 : vector<8x32xf32>
    %99 = vector.broadcast %80 : vector<1x32xf32> to vector<8x32xf32>
    %100 = arith.addf %98, %99 : vector<8x32xf32>
    %c0_39 = arith.constant 0 : index
    %c0_40 = arith.constant 0 : index
    %101 = vector.load %arg10[%c0_39, %c0_40] : memref<32x32xf32, #tpu.memory_space<vmem>>, vector<32x32xf32>
    %c0_41 = arith.constant 0 : index
    %c0_42 = arith.constant 0 : index
    %102 = vector.load %arg11[%c0_41, %c0_42] : memref<1x32xf32, #tpu.memory_space<vmem>>, vector<1x32xf32>
    %cst_43 = arith.constant dense<0.000000e+00> : vector<8x32xf32>
    %103 = tpu.matmul %100, %101, %cst_43 {dimension_numbers = #tpu.dot_dimension_numbers<[1], [0], [0], [1], [0, 0, 1, 1], [], []>} : vector<8x32xf32>, vector<32x32xf32>, vector<8x32xf32> -> vector<8x32xf32>
    %104 = vector.broadcast %102 : vector<1x32xf32> to vector<8x32xf32>
    %105 = arith.addf %103, %104 : vector<8x32xf32>
    %cst_44 = arith.constant 5.000000e-01 : f32
    %106 = vector.broadcast %cst_44 : f32 to vector<8x32xf32>
    %107 = arith.mulf %106, %105 : vector<8x32xf32>
    %cst_45 = arith.constant 0.707106769 : f32
    %108 = vector.broadcast %cst_45 : f32 to vector<8x32xf32>
    %109 = arith.mulf %105, %108 : vector<8x32xf32>
    %110 = math.absf %109 : vector<8x32xf32>
    %cst_46 = arith.constant 0.327591091 : f32
    %111 = vector.broadcast %cst_46 : f32 to vector<8x32xf32>
    %112 = arith.mulf %111, %110 : vector<8x32xf32>
    %cst_47 = arith.constant 1.000000e+00 : f32
    %113 = vector.broadcast %cst_47 : f32 to vector<8x32xf32>
    %114 = arith.addf %113, %112 : vector<8x32xf32>
    %cst_48 = arith.constant 1.000000e+00 : f32
    %115 = vector.broadcast %cst_48 : f32 to vector<8x32xf32>
    %116 = arith.divf %115, %114 : vector<8x32xf32>
    %cst_49 = arith.constant 1.06140542 : f32
    %117 = vector.broadcast %cst_49 : f32 to vector<8x32xf32>
    %118 = arith.mulf %117, %116 : vector<8x32xf32>
    %cst_50 = arith.constant -1.45315206 : f32
    %119 = vector.broadcast %cst_50 : f32 to vector<8x32xf32>
    %120 = arith.addf %118, %119 : vector<8x32xf32>
    %121 = arith.mulf %120, %116 : vector<8x32xf32>
    %cst_51 = arith.constant 1.42141378 : f32
    %122 = vector.broadcast %cst_51 : f32 to vector<8x32xf32>
    %123 = arith.addf %121, %122 : vector<8x32xf32>
    %124 = arith.mulf %123, %116 : vector<8x32xf32>
    %cst_52 = arith.constant -0.284496725 : f32
    %125 = vector.broadcast %cst_52 : f32 to vector<8x32xf32>
    %126 = arith.addf %124, %125 : vector<8x32xf32>
    %127 = arith.mulf %126, %116 : vector<8x32xf32>
    %cst_53 = arith.constant 0.254829586 : f32
    %128 = vector.broadcast %cst_53 : f32 to vector<8x32xf32>
    %129 = arith.addf %127, %128 : vector<8x32xf32>
    %130 = arith.mulf %129, %116 : vector<8x32xf32>
    %cst_54 = arith.constant 0.000000e+00 : f32
    %131 = vector.broadcast %cst_54 : f32 to vector<8x32xf32>
    %132 = arith.subf %131, %110 : vector<8x32xf32>
    %133 = arith.mulf %132, %110 : vector<8x32xf32>
    %134 = math.exp %133 : vector<8x32xf32>
    %135 = arith.mulf %130, %134 : vector<8x32xf32>
    %cst_55 = arith.constant 1.000000e+00 : f32
    %136 = vector.broadcast %cst_55 : f32 to vector<8x32xf32>
    %137 = arith.subf %136, %135 : vector<8x32xf32>
    %cst_56 = arith.constant 0.000000e+00 : f32
    %138 = vector.broadcast %cst_56 : f32 to vector<8x32xf32>
    %139 = arith.cmpf oge, %109, %138 : vector<8x32xf32>
    %cst_57 = arith.constant 0.000000e+00 : f32
    %140 = vector.broadcast %cst_57 : f32 to vector<8x32xf32>
    %141 = arith.subf %140, %137 : vector<8x32xf32>
    %142 = arith.select %139, %137, %141 : vector<8x32xi1>, vector<8x32xf32>
    %cst_58 = arith.constant 1.000000e+00 : f32
    %143 = vector.broadcast %cst_58 : f32 to vector<8x32xf32>
    %144 = arith.addf %143, %142 : vector<8x32xf32>
    %145 = arith.mulf %107, %144 : vector<8x32xf32>
    %c0_59 = arith.constant 0 : index
    %c0_60 = arith.constant 0 : index
    %146 = vector.load %arg12[%c0_59, %c0_60] : memref<32x32xf32, #tpu.memory_space<vmem>>, vector<32x32xf32>
    %c0_61 = arith.constant 0 : index
    %c0_62 = arith.constant 0 : index
    %147 = vector.load %arg13[%c0_61, %c0_62] : memref<1x32xf32, #tpu.memory_space<vmem>>, vector<1x32xf32>
    %cst_63 = arith.constant dense<0.000000e+00> : vector<8x32xf32>
    %148 = tpu.matmul %145, %146, %cst_63 {dimension_numbers = #tpu.dot_dimension_numbers<[1], [0], [0], [1], [0, 0, 1, 1], [], []>} : vector<8x32xf32>, vector<32x32xf32>, vector<8x32xf32> -> vector<8x32xf32>
    %149 = vector.broadcast %147 : vector<1x32xf32> to vector<8x32xf32>
    %150 = arith.addf %148, %149 : vector<8x32xf32>
    %cst_64 = arith.constant 5.000000e-01 : f32
    %151 = vector.broadcast %cst_64 : f32 to vector<8x32xf32>
    %152 = arith.mulf %151, %150 : vector<8x32xf32>
    %cst_65 = arith.constant 0.707106769 : f32
    %153 = vector.broadcast %cst_65 : f32 to vector<8x32xf32>
    %154 = arith.mulf %150, %153 : vector<8x32xf32>
    %155 = math.absf %154 : vector<8x32xf32>
    %cst_66 = arith.constant 0.327591091 : f32
    %156 = vector.broadcast %cst_66 : f32 to vector<8x32xf32>
    %157 = arith.mulf %156, %155 : vector<8x32xf32>
    %cst_67 = arith.constant 1.000000e+00 : f32
    %158 = vector.broadcast %cst_67 : f32 to vector<8x32xf32>
    %159 = arith.addf %158, %157 : vector<8x32xf32>
    %cst_68 = arith.constant 1.000000e+00 : f32
    %160 = vector.broadcast %cst_68 : f32 to vector<8x32xf32>
    %161 = arith.divf %160, %159 : vector<8x32xf32>
    %cst_69 = arith.constant 1.06140542 : f32
    %162 = vector.broadcast %cst_69 : f32 to vector<8x32xf32>
    %163 = arith.mulf %162, %161 : vector<8x32xf32>
    %cst_70 = arith.constant -1.45315206 : f32
    %164 = vector.broadcast %cst_70 : f32 to vector<8x32xf32>
    %165 = arith.addf %163, %164 : vector<8x32xf32>
    %166 = arith.mulf %165, %161 : vector<8x32xf32>
    %cst_71 = arith.constant 1.42141378 : f32
    %167 = vector.broadcast %cst_71 : f32 to vector<8x32xf32>
    %168 = arith.addf %166, %167 : vector<8x32xf32>
    %169 = arith.mulf %168, %161 : vector<8x32xf32>
    %cst_72 = arith.constant -0.284496725 : f32
    %170 = vector.broadcast %cst_72 : f32 to vector<8x32xf32>
    %171 = arith.addf %169, %170 : vector<8x32xf32>
    %172 = arith.mulf %171, %161 : vector<8x32xf32>
    %cst_73 = arith.constant 0.254829586 : f32
    %173 = vector.broadcast %cst_73 : f32 to vector<8x32xf32>
    %174 = arith.addf %172, %173 : vector<8x32xf32>
    %175 = arith.mulf %174, %161 : vector<8x32xf32>
    %cst_74 = arith.constant 0.000000e+00 : f32
    %176 = vector.broadcast %cst_74 : f32 to vector<8x32xf32>
    %177 = arith.subf %176, %155 : vector<8x32xf32>
    %178 = arith.mulf %177, %155 : vector<8x32xf32>
    %179 = math.exp %178 : vector<8x32xf32>
    %180 = arith.mulf %175, %179 : vector<8x32xf32>
    %cst_75 = arith.constant 1.000000e+00 : f32
    %181 = vector.broadcast %cst_75 : f32 to vector<8x32xf32>
    %182 = arith.subf %181, %180 : vector<8x32xf32>
    %cst_76 = arith.constant 0.000000e+00 : f32
    %183 = vector.broadcast %cst_76 : f32 to vector<8x32xf32>
    %184 = arith.cmpf oge, %154, %183 : vector<8x32xf32>
    %cst_77 = arith.constant 0.000000e+00 : f32
    %185 = vector.broadcast %cst_77 : f32 to vector<8x32xf32>
    %186 = arith.subf %185, %182 : vector<8x32xf32>
    %187 = arith.select %184, %182, %186 : vector<8x32xi1>, vector<8x32xf32>
    %cst_78 = arith.constant 1.000000e+00 : f32
    %188 = vector.broadcast %cst_78 : f32 to vector<8x32xf32>
    %189 = arith.addf %188, %187 : vector<8x32xf32>
    %190 = arith.mulf %152, %189 : vector<8x32xf32>
    %191 = arith.addf %190, %78 : vector<8x32xf32>
    %192 = vector.shape_cast %191 : vector<8x32xf32> to vector<1x8x32xf32>
    %c0_79 = arith.constant 0 : index
    %c0_80 = arith.constant 0 : index
    %c0_81 = arith.constant 0 : index
    %193 = vector.load %arg14[%c0_79, %c0_80, %c0_81] : memref<1x8x32xf32, #tpu.memory_space<vmem>>, vector<1x8x32xf32>
    tpu.vector_store %arg14[%c0_79, %c0_80, %c0_81], %192 {strides = array<i32>} : memref<1x8x32xf32, #tpu.memory_space<vmem>>, vector<1x8x32xf32>,
    return
  }
  func.func @transform_0(%arg0: i32) -> (i32, i32, i32) {
    %c0_i32 = arith.constant 0 : i32
    %c0_i32_0 = arith.constant 0 : i32
    %c0_i32_1 = arith.constant 0 : i32
    return %arg0, %c0_i32, %c0_i32_0 : i32, i32, i32
  }
  func.func @transform_1(%arg0: i32) -> (i32, i32) {
    %c0_i32 = arith.constant 0 : i32
    %c0_i32_0 = arith.constant 0 : i32
    %c0_i32_1 = arith.constant 0 : i32
    return %c0_i32, %c0_i32_0 : i32, i32
  }
  func.func @transform_2(%arg0: i32) -> (i32, i32) {
    %c0_i32 = arith.constant 0 : i32
    %c0_i32_0 = arith.constant 0 : i32
    %c0_i32_1 = arith.constant 0 : i32
    return %c0_i32, %c0_i32_0 : i32, i32
  }
  func.func @transform_3(%arg0: i32) -> (i32, i32) {
    %c0_i32 = arith.constant 0 : i32
    %c0_i32_0 = arith.constant 0 : i32
    %c0_i32_1 = arith.constant 0 : i32
    return %c0_i32, %c0_i32_0 : i32, i32
  }
  func.func @transform_4(%arg0: i32) -> (i32, i32) {
    %c0_i32 = arith.constant 0 : i32
    %c0_i32_0 = arith.constant 0 : i32
    %c0_i32_1 = arith.constant 0 : i32
    return %c0_i32, %c0_i32_0 : i32, i32
  }
  func.func @transform_5(%arg0: i32) -> (i32, i32) {
    %c0_i32 = arith.constant 0 : i32
    %c0_i32_0 = arith.constant 0 : i32
    %c0_i32_1 = arith.constant 0 : i32
    return %c0_i32, %c0_i32_0 : i32, i32
  }
  func.func @transform_6(%arg0: i32) -> (i32, i32) {
    %c0_i32 = arith.constant 0 : i32
    %c0_i32_0 = arith.constant 0 : i32
    %c0_i32_1 = arith.constant 0 : i32
    return %c0_i32, %c0_i32_0 : i32, i32
  }
  func.func @transform_7(%arg0: i32) -> (i32, i32) {
    %c0_i32 = arith.constant 0 : i32
    %c0_i32_0 = arith.constant 0 : i32
    %c0_i32_1 = arith.constant 0 : i32
    return %c0_i32, %c0_i32_0 : i32, i32
  }
  func.func @transform_8(%arg0: i32) -> (i32, i32) {
    %c0_i32 = arith.constant 0 : i32
    %c0_i32_0 = arith.constant 0 : i32
    %c0_i32_1 = arith.constant 0 : i32
    return %c0_i32, %c0_i32_0 : i32, i32
  }
  func.func @transform_9(%arg0: i32) -> (i32, i32) {
    %c0_i32 = arith.constant 0 : i32
    %c0_i32_0 = arith.constant 0 : i32
    %c0_i32_1 = arith.constant 0 : i32
    return %c0_i32, %c0_i32_0 : i32, i32
  }
  func.func @transform_10(%arg0: i32) -> (i32, i32) {
    %c0_i32 = arith.constant 0 : i32
    %c0_i32_0 = arith.constant 0 : i32
    %c0_i32_1 = arith.constant 0 : i32
    return %c0_i32, %c0_i32_0 : i32, i32
  }
  func.func @transform_11(%arg0: i32) -> (i32, i32) {
    %c0_i32 = arith.constant 0 : i32
    %c0_i32_0 = arith.constant 0 : i32
    %c0_i32_1 = arith.constant 0 : i32
    return %c0_i32, %c0_i32_0 : i32, i32
  }
  func.func @transform_12(%arg0: i32) -> (i32, i32) {
    %c0_i32 = arith.constant 0 : i32
    %c0_i32_0 = arith.constant 0 : i32
    %c0_i32_1 = arith.constant 0 : i32
    return %c0_i32, %c0_i32_0 : i32, i32
  }
  func.func @transform_13(%arg0: i32) -> (i32, i32, i32) {
    %c0_i32 = arith.constant 0 : i32
    %c0_i32_0 = arith.constant 0 : i32
    %c0_i32_1 = arith.constant 0 : i32
    return %arg0, %c0_i32, %c0_i32_0 : i32, i32, i32
  }
}

</mosaic_0001>

<llo_original>
// kernel: tpu_custom_call.1
$region0: #{tpu_custom_call.1}
  #allocation0 [shape = 'u32[]', space=smem, size = 0x4, offset = 0x4, fixed_abs, tag = 'smem constant byte address 0x4 - core index']
  #allocation1 [shape = 'u32[144,128]{1,0:T(1,128)}', space=vmem, size = 0x12000, scoped, tag = 'internal scratch']
  %s0 = inlined_call_operand.hbm [shape: f32[2,8,32], index: 0, kind: input, shape index: {}]
  %s1 = inlined_call_operand.vmem [shape: f32[1,32], index: 1, kind: input, shape index: {}]
  %s2 = inlined_call_operand.vmem [shape: f32[1,32], index: 2, kind: input, shape index: {}]
  %s3 = inlined_call_operand.hbm [shape: f32[32,96], index: 3, kind: input, shape index: {}]
  %s4 = inlined_call_operand.hbm [shape: f32[1,96], index: 4, kind: input, shape index: {}]
  %s5 = inlined_call_operand.hbm [shape: f32[32,32], index: 5, kind: input, shape index: {}]
  %s6 = inlined_call_operand.hbm [shape: f32[1,32], index: 6, kind: input, shape index: {}]
  %s7 = inlined_call_operand.hbm [shape: f32[1,32], index: 7, kind: input, shape index: {}]
  %s8 = inlined_call_operand.hbm [shape: f32[1,32], index: 8, kind: input, shape index: {}]
  %s9 = inlined_call_operand.vmem [shape: f32[32,32], index: 9, kind: input, shape index: {}]
  %s10 = inlined_call_operand.vmem [shape: f32[1,32], index: 10, kind: input, shape index: {}]
  %s11 = inlined_call_operand.hbm [shape: f32[32,32], index: 11, kind: input, shape index: {}]
  %s12 = inlined_call_operand.vmem [shape: f32[1,32], index: 12, kind: input, shape index: {}]
  %s13 = inlined_call_operand.hbm [shape: f32[2,8,32], index: 13, kind: output, shape index: {}]
  %s14 = sld [smem:[#allocation0]]
  $region117: #{tpu_custom_call.1} parent=0
    _
  %s16 = ssub.s32 1, %s14
  %s17 = scalar_select 0, %s16, %s14
  $region1: #{tpu_custom_call.1} parent=0
    #allocation2 [shape = 'u8[8192]{0}', space=vmem, size = 0x2000, scoped, tag = 'input window, operand 0']
    #allocation3 [shape = 's32[2]{0}', space=sflag, size = 0x8, scoped, tag = 'scoped memory for tpu_custom_call.1']
    #allocation4 [shape = 's32[2]{0}', space=sflag, size = 0x8, scoped, tag = 'scoped memory for tpu_custom_call.1']
    #allocation5 [shape = 'u8[16384]{0}', space=vmem, size = 0x4000, scoped, tag = 'input window, operand 3, single buffered']
    #allocation6 [shape = 's32[1]{0}', space=sflag, size = 0x4, scoped, tag = 'scoped memory for tpu_custom_call.1']
    #allocation7 [shape = 'u8[512]{0}', space=vmem, size = 0x400, scoped, tag = 'input window, operand 4, single buffered']
    #allocation8 [shape = 'u8[16384]{0}', space=vmem, size = 0x4000, scoped, tag = 'input window, operand 5, single buffered']
    #allocation9 [shape = 's32[1]{0}', space=sflag, size = 0x4, scoped, tag = 'scoped memory for tpu_custom_call.1']
    #allocation10 [shape = 'u8[512]{0}', space=vmem, size = 0x400, scoped, tag = 'input window, operand 6, single buffered']
    #allocation11 [shape = 'u8[512]{0}', space=vmem, size = 0x400, scoped, tag = 'input window, operand 7, single buffered']
    #allocation12 [shape = 's32[1]{0}', space=sflag, size = 0x4, scoped, tag = 'scoped memory for tpu_custom_call.1']
    #allocation13 [shape = 'u8[512]{0}', space=vmem, size = 0x400, scoped, tag = 'input window, operand 8, single buffered']
    #allocation14 [shape = 'u8[16384]{0}', space=vmem, size = 0x4000, scoped, tag = 'input window, operand 11, single buffered']
    #allocation15 [shape = 's32[1]{0}', space=sflag, size = 0x4, scoped, tag = 'scoped memory for tpu_custom_call.1']
    #allocation16 [shape = 'u8[8192]{0}', space=vmem, size = 0x2000, scoped, tag = 'output window, operand 0']
    %18 = vsyncpa [#allocation3], 0
    %s19 = scalar_lea.sflag [#allocation3], 1
    %20 = vsyncpa %s19, 0
    %21 = vsyncpa [#allocation6], 0
    %22 = vsyncpa [#allocation9], 0
    %23 = vsyncpa [#allocation12], 0
    %24 = vsyncpa [#allocation15], 0
    %25 = vsyncpa [#allocation4], 0
    %s26 = scalar_lea.sflag [#allocation4], 1
    %27 = vsyncpa %s26, 0
    loop: start=0, step=1, limit=4
    $region2: #{tpu_custom_call.1} parent=1 // loop_pre_header
      _
    $region3: #{tpu_custom_call.1} parent=1 // loop_header
      %s29 = sphi 0, %s33
      %p30 = scmp.ge.s32.totalorder %s29, 4
      %s39 = sphi 0, %s41
      %s42 = sphi 0, %s39
      %s43 = sphi 0, %s42
      %s59 = sphi 0, %s43
      %s63 = sphi 0, %s63
      %s65 = sphi 0, %s63
      %s66 = sphi 0, %s65
      %s80 = sphi 0, %s66
      %s84 = sphi 0, %s84
      %s86 = sphi 0, %s84
      %s87 = sphi 0, %s86
      %s101 = sphi 0, %s87
      %s105 = sphi 0, %s105
      %s107 = sphi 0, %s105
      %s108 = sphi 0, %s107
      %s122 = sphi 0, %s108
      %s126 = sphi 0, %s126
      %s128 = sphi 0, %s126
      %s129 = sphi 0, %s128
      %s143 = sphi 0, %s129
      %s147 = sphi 0, %s147
      %s149 = sphi 0, %s147
      %s150 = sphi 0, %s149
      %s164 = sphi 0, %s150
      %s168 = sphi 0, %s168
      %s170 = sphi 0, %s168
      %s171 = sphi 0, %s170
      %s185 = sphi 0, %s171
      %s189 = sphi 0, %s189
      %s191 = sphi 0, %s189
      %s192 = sphi 0, %s191
      %s206 = sphi 0, %s192
      %s210 = sphi 0, %s210
      %s212 = sphi 0, %s210
      %s213 = sphi 0, %s212
      %s227 = sphi 0, %s213
      %s231 = sphi 0, %s231
      %s233 = sphi 0, %s231
      %s234 = sphi 0, %s233
      %s248 = sphi 0, %s234
      %s252 = sphi 0, %s252
      %s254 = sphi 0, %s252
      %s255 = sphi 0, %s254
      %s269 = sphi 0, %s255
      %s273 = sphi 0, %s273
      %s275 = sphi 0, %s273
      %s276 = sphi 0, %s275
      %s290 = sphi 0, %s276
      %s294 = sphi 0, %s294
      %s296 = sphi 0, %s294
      %s297 = sphi 0, %s296
      %s311 = sphi 0, %s297
      %s317 = sphi 0, %s319
      %s320 = sphi 0, %s317
      %s321 = sphi 0, %s320
      %s337 = sphi 0, %s321
    $region4: #{tpu_custom_call.1} parent=1 // loop_header_branch
      %32 = sbr.rel (%p30) target = $region8
    $region5: #{tpu_custom_call.1} parent=1 // loop_body
      %s34 = ssub.s32 %s29, 1
      %s35 = ssub.s32 %s29, 2
      %s36 = sadd.s32 %s29, 1
      %s37 = ssub.s32 %s29, %s36
      %p38 = scmp.eq.s32.totalorder %s37, 0
      %s40 = sadd.s32 %s39, 1
      %s41 = scalar_select %p38, %s39, %s40
      %p44 = pneg %p38
      %p45 = scmp.eq.s32.totalorder %s29, 1
      %p46 = por %p44, %p45
      %p47 = scmp.ne.s32.totalorder %s39, %s42
      %p48 = scmp.eq.s32.totalorder %s29, 0
      %p49 = por %p47, %p48
      %p50 = scmp.ne.s32.totalorder %s39, %s42
      %p51 = scmp.eq.s32.totalorder %s34, 1
      %p52 = por %p50, %p51
      %p53 = scmp.ne.s32.totalorder %s42, %s43
      %p54 = scmp.eq.s32.totalorder %s34, 0
      %p55 = por %p53, %p54
      %p56 = scmp.ne.s32.totalorder %s42, %s43
      %p57 = scmp.eq.s32.totalorder %s35, 1
      %p58 = por %p56, %p57
      %p60 = scmp.ne.s32.totalorder %s43, %s59
      %p61 = scmp.eq.s32.totalorder %s35, 0
      %p62 = por %p60, %p61
      %s64 = sadd.s32 %s63, 1
      %p67 = scmp.eq.s32.totalorder %s29, 1
      %p68 = scmp.ne.s32.totalorder %s63, %s65
      %p69 = scmp.eq.s32.totalorder %s29, 0
      %p70 = por %p68, %p69
      %p71 = scmp.ne.s32.totalorder %s63, %s65
      %p72 = scmp.eq.s32.totalorder %s34, 1
      %p73 = por %p71, %p72
      %p74 = scmp.ne.s32.totalorder %s65, %s66
      %p75 = scmp.eq.s32.totalorder %s34, 0
      %p76 = por %p74, %p75
      %p77 = scmp.ne.s32.totalorder %s65, %s66
      %p78 = scmp.eq.s32.totalorder %s35, 1
      %p79 = por %p77, %p78
      %p81 = scmp.ne.s32.totalorder %s66, %s80
      %p82 = scmp.eq.s32.totalorder %s35, 0
      %p83 = por %p81, %p82
      %s85 = sadd.s32 %s84, 1
      %p88 = scmp.eq.s32.totalorder %s29, 1
      %p89 = scmp.ne.s32.totalorder %s84, %s86
      %p90 = scmp.eq.s32.totalorder %s29, 0
      %p91 = por %p89, %p90
      %p92 = scmp.ne.s32.totalorder %s84, %s86
      %p93 = scmp.eq.s32.totalorder %s34, 1
      %p94 = por %p92, %p93
      %p95 = scmp.ne.s32.totalorder %s86, %s87
      %p96 = scmp.eq.s32.totalorder %s34, 0
      %p97 = por %p95, %p96
      %p98 = scmp.ne.s32.totalorder %s86, %s87
      %p99 = scmp.eq.s32.totalorder %s35, 1
      %p100 = por %p98, %p99
      %p102 = scmp.ne.s32.totalorder %s87, %s101
      %p103 = scmp.eq.s32.totalorder %s35, 0
      %p104 = por %p102, %p103
      %s106 = sadd.s32 %s105, 1
      %p109 = scmp.eq.s32.totalorder %s29, 1
      %p110 = scmp.ne.s32.totalorder %s105, %s107
      %p111 = scmp.eq.s32.totalorder %s29, 0
      %p112 = por %p110, %p111
      %p113 = scmp.ne.s32.totalorder %s105, %s107
      %p114 = scmp.eq.s32.totalorder %s34, 1
      %p115 = por %p113, %p114
      %p116 = scmp.ne.s32.totalorder %s107, %s108
      %p117 = scmp.eq.s32.totalorder %s34, 0
      %p118 = por %p116, %p117
      %p119 = scmp.ne.s32.totalorder %s107, %s108
      %p120 = scmp.eq.s32.totalorder %s35, 1
      %p121 = por %p119, %p120
      %p123 = scmp.ne.s32.totalorder %s108, %s122
      %p124 = scmp.eq.s32.totalorder %s35, 0
      %p125 = por %p123, %p124
      %s127 = sadd.s32 %s126, 1
      %p130 = scmp.eq.s32.totalorder %s29, 1
      %p131 = scmp.ne.s32.totalorder %s126, %s128
      %p132 = scmp.eq.s32.totalorder %s29, 0
      %p133 = por %p131, %p132
      %p134 = scmp.ne.s32.totalorder %s126, %s128
      %p135 = scmp.eq.s32.totalorder %s34, 1
      %p136 = por %p134, %p135
      %p137 = scmp.ne.s32.totalorder %s128, %s129
      %p138 = scmp.eq.s32.totalorder %s34, 0
      %p139 = por %p137, %p138
      %p140 = scmp.ne.s32.totalorder %s128, %s129
      %p141 = scmp.eq.s32.totalorder %s35, 1
      %p142 = por %p140, %p141
      %p144 = scmp.ne.s32.totalorder %s129, %s143
      %p145 = scmp.eq.s32.totalorder %s35, 0
      %p146 = por %p144, %p145
      %s148 = sadd.s32 %s147, 1
      %p151 = scmp.eq.s32.totalorder %s29, 1
      %p152 = scmp.ne.s32.totalorder %s147, %s149
      %p153 = scmp.eq.s32.totalorder %s29, 0
      %p154 = por %p152, %p153
      %p155 = scmp.ne.s32.totalorder %s147, %s149
      %p156 = scmp.eq.s32.totalorder %s34, 1
      %p157 = por %p155, %p156
      %p158 = scmp.ne.s32.totalorder %s149, %s150
      %p159 = scmp.eq.s32.totalorder %s34, 0
      %p160 = por %p158, %p159
      %p161 = scmp.ne.s32.totalorder %s149, %s150
      %p162 = scmp.eq.s32.totalorder %s35, 1
      %p163 = por %p161, %p162
      %p165 = scmp.ne.s32.totalorder %s150, %s164
      %p166 = scmp.eq.s32.totalorder %s35, 0
      %p167 = por %p165, %p166
      %s169 = sadd.s32 %s168, 1
      %p172 = scmp.eq.s32.totalorder %s29, 1
      %p173 = scmp.ne.s32.totalorder %s168, %s170
      %p174 = scmp.eq.s32.totalorder %s29, 0
      %p175 = por %p173, %p174
      %p176 = scmp.ne.s32.totalorder %s168, %s170
      %p177 = scmp.eq.s32.totalorder %s34, 1
      %p178 = por %p176, %p177
      %p179 = scmp.ne.s32.totalorder %s170, %s171
      %p180 = scmp.eq.s32.totalorder %s34, 0
      %p181 = por %p179, %p180
      %p182 = scmp.ne.s32.totalorder %s170, %s171
      %p183 = scmp.eq.s32.totalorder %s35, 1
      %p184 = por %p182, %p183
      %p186 = scmp.ne.s32.totalorder %s171, %s185
      %p187 = scmp.eq.s32.totalorder %s35, 0
      %p188 = por %p186, %p187
      %s190 = sadd.s32 %s189, 1
      %p193 = scmp.eq.s32.totalorder %s29, 1
      %p194 = scmp.ne.s32.totalorder %s189, %s191
      %p195 = scmp.eq.s32.totalorder %s29, 0
      %p196 = por %p194, %p195
      %p197 = scmp.ne.s32.totalorder %s189, %s191
      %p198 = scmp.eq.s32.totalorder %s34, 1
      %p199 = por %p197, %p198
      %p200 = scmp.ne.s32.totalorder %s191, %s192
      %p201 = scmp.eq.s32.totalorder %s34, 0
      %p202 = por %p200, %p201
      %p203 = scmp.ne.s32.totalorder %s191, %s192
      %p204 = scmp.eq.s32.totalorder %s35, 1
      %p205 = por %p203, %p204
      %p207 = scmp.ne.s32.totalorder %s192, %s206
      %p208 = scmp.eq.s32.totalorder %s35, 0
      %p209 = por %p207, %p208
      %s211 = sadd.s32 %s210, 1
      %p214 = scmp.eq.s32.totalorder %s29, 1
      %p215 = scmp.ne.s32.totalorder %s210, %s212
      %p216 = scmp.eq.s32.totalorder %s29, 0
      %p217 = por %p215, %p216
      %p218 = scmp.ne.s32.totalorder %s210, %s212
      %p219 = scmp.eq.s32.totalorder %s34, 1
      %p220 = por %p218, %p219
      %p221 = scmp.ne.s32.totalorder %s212, %s213
      %p222 = scmp.eq.s32.totalorder %s34, 0
      %p223 = por %p221, %p222
      %p224 = scmp.ne.s32.totalorder %s212, %s213
      %p225 = scmp.eq.s32.totalorder %s35, 1
      %p226 = por %p224, %p225
      %p228 = scmp.ne.s32.totalorder %s213, %s227
      %p229 = scmp.eq.s32.totalorder %s35, 0
      %p230 = por %p228, %p229
      %s232 = sadd.s32 %s231, 1
      %p235 = scmp.eq.s32.totalorder %s29, 1
      %p236 = scmp.ne.s32.totalorder %s231, %s233
      %p237 = scmp.eq.s32.totalorder %s29, 0
      %p238 = por %p236, %p237
      %p239 = scmp.ne.s32.totalorder %s231, %s233
      %p240 = scmp.eq.s32.totalorder %s34, 1
      %p241 = por %p239, %p240
      %p242 = scmp.ne.s32.totalorder %s233, %s234
      %p243 = scmp.eq.s32.totalorder %s34, 0
      %p244 = por %p242, %p243
      %p245 = scmp.ne.s32.totalorder %s233, %s234
      %p246 = scmp.eq.s32.totalorder %s35, 1
      %p247 = por %p245, %p246
      %p249 = scmp.ne.s32.totalorder %s234, %s248
      %p250 = scmp.eq.s32.totalorder %s35, 0
      %p251 = por %p249, %p250
      %s253 = sadd.s32 %s252, 1
      %p256 = scmp.eq.s32.totalorder %s29, 1
      %p257 = scmp.ne.s32.totalorder %s252, %s254
      %p258 = scmp.eq.s32.totalorder %s29, 0
      %p259 = por %p257, %p258
      %p260 = scmp.ne.s32.totalorder %s252, %s254
      %p261 = scmp.eq.s32.totalorder %s34, 1
      %p262 = por %p260, %p261
      %p263 = scmp.ne.s32.totalorder %s254, %s255
      %p264 = scmp.eq.s32.totalorder %s34, 0
      %p265 = por %p263, %p264
      %p266 = scmp.ne.s32.totalorder %s254, %s255
      %p267 = scmp.eq.s32.totalorder %s35, 1
      %p268 = por %p266, %p267
      %p270 = scmp.ne.s32.totalorder %s255, %s269
      %p271 = scmp.eq.s32.totalorder %s35, 0
      %p272 = por %p270, %p271
      %s274 = sadd.s32 %s273, 1
      %p277 = scmp.eq.s32.totalorder %s29, 1
      %p278 = scmp.ne.s32.totalorder %s273, %s275
      %p279 = scmp.eq.s32.totalorder %s29, 0
      %p280 = por %p278, %p279
      %p281 = scmp.ne.s32.totalorder %s273, %s275
      %p282 = scmp.eq.s32.totalorder %s34, 1
      %p283 = por %p281, %p282
      %p284 = scmp.ne.s32.totalorder %s275, %s276
      %p285 = scmp.eq.s32.totalorder %s34, 0
      %p286 = por %p284, %p285
      %p287 = scmp.ne.s32.totalorder %s275, %s276
      %p288 = scmp.eq.s32.totalorder %s35, 1
      %p289 = por %p287, %p288
      %p291 = scmp.ne.s32.totalorder %s276, %s290
      %p292 = scmp.eq.s32.totalorder %s35, 0
      %p293 = por %p291, %p292
      %s295 = sadd.s32 %s294, 1
      %p298 = scmp.eq.s32.totalorder %s29, 1
      %p299 = scmp.ne.s32.totalorder %s294, %s296
      %p300 = scmp.eq.s32.totalorder %s29, 0
      %p301 = por %p299, %p300
      %p302 = scmp.ne.s32.totalorder %s294, %s296
      %p303 = scmp.eq.s32.totalorder %s34, 1
      %p304 = por %p302, %p303
      %p305 = scmp.ne.s32.totalorder %s296, %s297
      %p306 = scmp.eq.s32.totalorder %s34, 0
      %p307 = por %p305, %p306
      %p308 = scmp.ne.s32.totalorder %s296, %s297
      %p309 = scmp.eq.s32.totalorder %s35, 1
      %p310 = por %p308, %p309
      %p312 = scmp.ne.s32.totalorder %s297, %s311
      %p313 = scmp.eq.s32.totalorder %s35, 0
      %p314 = por %p312, %p313
      %s315 = ssub.s32 %s29, %s36
      %p316 = scmp.eq.s32.totalorder %s315, 0
      %s318 = sadd.s32 %s317, 1
      %s319 = scalar_select %p316, %s317, %s318
      %p322 = pneg %p316
      %p323 = scmp.eq.s32.totalorder %s29, 1
      %p324 = por %p322, %p323
      %p325 = scmp.ne.s32.totalorder %s317, %s320
      %p326 = scmp.eq.s32.totalorder %s29, 0
      %p327 = por %p325, %p326
      %p328 = scmp.ne.s32.totalorder %s317, %s320
      %p329 = scmp.eq.s32.totalorder %s34, 1
      %p330 = por %p328, %p329
      %p331 = scmp.ne.s32.totalorder %s320, %s321
      %p332 = scmp.eq.s32.totalorder %s34, 0
      %p333 = por %p331, %p332
      %p334 = scmp.ne.s32.totalorder %s320, %s321
      %p335 = scmp.eq.s32.totalorder %s35, 1
      %p336 = por %p334, %p335
      %p338 = scmp.ne.s32.totalorder %s321, %s337
      %p339 = scmp.eq.s32.totalorder %s35, 0
      %p340 = por %p338, %p339
      %p341 = scmp.le.s32.totalorder 1, %s29
      %p342 = scmp.lt.s32.totalorder %s29, 3
      %p343 = pnand %p341, %p342
      %p344 = pneg %p343
      // Predicated region
      $region9: #{tpu_custom_call.1} parent=5 // pred_check
        _
      $region10: #{tpu_custom_call.1} parent=5 // pred_check_branch
        %346 = sbr.rel (%p343) target = $region12
      $region11: #{tpu_custom_call.1} parent=5 // pred_region
        %s347 = ssub.s32 %s29, 1
        // Predicated region
        $region13: #{tpu_custom_call.1} parent=11 // pred_check
          %p348 = pneg %p76
        $region14: #{tpu_custom_call.1} parent=11 // pred_check_branch
          %350 = sbr.rel (%p348) target = $region16
        $region15: #{tpu_custom_call.1} parent=11 // pred_region
          _
        $region16: #{tpu_custom_call.1} parent=11 // pred_fallthru
          _
        // Predicated region
        $region17: #{tpu_custom_call.1} parent=11 // pred_check
          %p351 = pneg %p97
        $region18: #{tpu_custom_call.1} parent=11 // pred_check_branch
          %353 = sbr.rel (%p351) target = $region20
        $region19: #{tpu_custom_call.1} parent=11 // pred_region
          _
        $region20: #{tpu_custom_call.1} parent=11 // pred_fallthru
          _
        // Predicated region
        $region21: #{tpu_custom_call.1} parent=11 // pred_check
          %p354 = pneg %p118
        $region22: #{tpu_custom_call.1} parent=11 // pred_check_branch
          %356 = sbr.rel (%p354) target = $region24
        $region23: #{tpu_custom_call.1} parent=11 // pred_region
          %s358 = ssub.s32 512, 512
          %359 = vsyncadd [#allocation6], %s358
          %s360 = sshll.u32 [#allocation5], 4
          %s361 = int_to_ptr.vmem [resolvable:$true] %s360
          %366 = dma.hbm_to_vmem [thread:$0]  %s3, 512, %s361, [#allocation6], 128, 128, 8
        $region24: #{tpu_custom_call.1} parent=11 // pred_fallthru
          _
        // Predicated region
        $region25: #{tpu_custom_call.1} parent=11 // pred_check
          %p367 = pneg %p139
        $region26: #{tpu_custom_call.1} parent=11 // pred_check_branch
          %369 = sbr.rel (%p367) target = $region28
        $region27: #{tpu_custom_call.1} parent=11 // pred_region
          %s371 = ssub.s32 16, 16
          %372 = vsyncadd [#allocation6], %s371
          %s374 = sshll.u32 [#allocation7], 4
          %s375 = int_to_ptr.vmem [resolvable:$true] %s374
          %377 = dma.hbm_to_vmem [thread:$0]  %s4, 16, %s375, [#allocation6]
        $region28: #{tpu_custom_call.1} parent=11 // pred_fallthru
          _
        // Predicated region
        $region29: #{tpu_custom_call.1} parent=11 // pred_check
          %p378 = pneg %p160
        $region30: #{tpu_custom_call.1} parent=11 // pred_check_branch
          %380 = sbr.rel (%p378) target = $region32
        $region31: #{tpu_custom_call.1} parent=11 // pred_region
          %s382 = ssub.s32 512, 512
          %383 = vsyncadd [#allocation9], %s382
          %s384 = sshll.u32 [#allocation8], 4
          %s385 = int_to_ptr.vmem [resolvable:$true] %s384
          %390 = dma.hbm_to_vmem [thread:$0]  %s5, 512, %s385, [#allocation9], 128, 128, 8
        $region32: #{tpu_custom_call.1} parent=11 // pred_fallthru
          _
        // Predicated region
        $region33: #{tpu_custom_call.1} parent=11 // pred_check
          %p391 = pneg %p181
        $region34: #{tpu_custom_call.1} parent=11 // pred_check_branch
          %393 = sbr.rel (%p391) target = $region36
        $region35: #{tpu_custom_call.1} parent=11 // pred_region
          %s395 = ssub.s32 16, 16
          %396 = vsyncadd [#allocation9], %s395
          %s398 = sshll.u32 [#allocation10], 4
          %s399 = int_to_ptr.vmem [resolvable:$true] %s398
          %401 = dma.hbm_to_vmem [thread:$0]  %s6, 16, %s399, [#allocation9]
        $region36: #{tpu_custom_call.1} parent=11 // pred_fallthru
          _
        // Predicated region
        $region37: #{tpu_custom_call.1} parent=11 // pred_check
          %p402 = pneg %p202
        $region38: #{tpu_custom_call.1} parent=11 // pred_check_branch
          %404 = sbr.rel (%p402) target = $region40
        $region39: #{tpu_custom_call.1} parent=11 // pred_region
          %s406 = ssub.s32 16, 16
          %407 = vsyncadd [#allocation12], %s406
          %s409 = sshll.u32 [#allocation11], 4
          %s410 = int_to_ptr.vmem [resolvable:$true] %s409
          %412 = dma.hbm_to_vmem [thread:$0]  %s7, 16, %s410, [#allocation12]
        $region40: #{tpu_custom_call.1} parent=11 // pred_fallthru
          _
        // Predicated region
        $region41: #{tpu_custom_call.1} parent=11 // pred_check
          %p413 = pneg %p223
        $region42: #{tpu_custom_call.1} parent=11 // pred_check_branch
          %415 = sbr.rel (%p413) target = $region44
        $region43: #{tpu_custom_call.1} parent=11 // pred_region
          %s417 = ssub.s32 16, 16
          %418 = vsyncadd [#allocation12], %s417
          %s420 = sshll.u32 [#allocation13], 4
          %s421 = int_to_ptr.vmem [resolvable:$true] %s420
          %423 = dma.hbm_to_vmem [thread:$0]  %s8, 16, %s421, [#allocation12]
        $region44: #{tpu_custom_call.1} parent=11 // pred_fallthru
          _
        // Predicated region
        $region45: #{tpu_custom_call.1} parent=11 // pred_check
          %p424 = pneg %p244
        $region46: #{tpu_custom_call.1} parent=11 // pred_check_branch
          %426 = sbr.rel (%p424) target = $region48
        $region47: #{tpu_custom_call.1} parent=11 // pred_region
          _
        $region48: #{tpu_custom_call.1} parent=11 // pred_fallthru
          _
        // Predicated region
        $region49: #{tpu_custom_call.1} parent=11 // pred_check
          %p427 = pneg %p265
        $region50: #{tpu_custom_call.1} parent=11 // pred_check_branch
          %429 = sbr.rel (%p427) target = $region52
        $region51: #{tpu_custom_call.1} parent=11 // pred_region
          _
        $region52: #{tpu_custom_call.1} parent=11 // pred_fallthru
          _
        // Predicated region
        $region53: #{tpu_custom_call.1} parent=11 // pred_check
          %p430 = pneg %p286
        $region54: #{tpu_custom_call.1} parent=11 // pred_check_branch
          %432 = sbr.rel (%p430) target = $region56
        $region55: #{tpu_custom_call.1} parent=11 // pred_region
          %s434 = ssub.s32 512, 512
          %435 = vsyncadd [#allocation15], %s434
          %s436 = sshll.u32 [#allocation14], 4
          %s437 = int_to_ptr.vmem [resolvable:$true] %s436
          %442 = dma.hbm_to_vmem [thread:$0]  %s11, 512, %s437, [#allocation15], 128, 128, 8
        $region56: #{tpu_custom_call.1} parent=11 // pred_fallthru
          _
        // Predicated region
        $region57: #{tpu_custom_call.1} parent=11 // pred_check
          %p443 = pneg %p307
        $region58: #{tpu_custom_call.1} parent=11 // pred_check_branch
          %445 = sbr.rel (%p443) target = $region60
        $region59: #{tpu_custom_call.1} parent=11 // pred_region
          _
        $region60: #{tpu_custom_call.1} parent=11 // pred_fallthru
          _
      $region12: #{tpu_custom_call.1} parent=5 // pred_fallthru
        _
      %p446 = scmp.lt.s32.totalorder %s29, 2
      // Predicated region
      $region61: #{tpu_custom_call.1} parent=5 // pred_check
        %p447 = pneg %p446
      $region62: #{tpu_custom_call.1} parent=5 // pred_check_branch
        %449 = sbr.rel (%p447) target = $region64
      $region63: #{tpu_custom_call.1} parent=5 // pred_region
        // Predicated region
        $region65: #{tpu_custom_call.1} parent=63 // pred_check
          %p450 = pneg %p49
        $region66: #{tpu_custom_call.1} parent=63 // pred_check_branch
          %452 = sbr.rel (%p450) target = $region68
        $region67: #{tpu_custom_call.1} parent=63 // pred_region
          %s453 = sand.u32 %s39, 1
          %s454 = scalar_lea.sflag [#allocation3], %s453
          %s455 = sand.u32 %s39, 1
          %s456 = smul.addr %s455, 8
          %s457 = scalar_lea.vmem [#allocation2], %s456
          %s459 = ssub.s32 128, 128
          %460 = vsyncadd %s454, %s459
          %s461 = smul.addr %s29, 128
          %s462 = scalar_lea.hbm %s0, %s461
          %s464 = sshll.u32 %s457, 4
          %s465 = int_to_ptr.vmem [resolvable:$true] %s464
          %467 = dma.hbm_to_vmem [thread:$0]  %s462, 128, %s465, %s454
        $region68: #{tpu_custom_call.1} parent=63 // pred_fallthru
          _
      $region64: #{tpu_custom_call.1} parent=5 // pred_fallthru
        _
      %p468 = scmp.le.s32.totalorder 1, %s29
      %p469 = scmp.lt.s32.totalorder %s29, 3
      %p470 = pnand %p468, %p469
      %p471 = pneg %p470
      // Predicated region
      $region69: #{tpu_custom_call.1} parent=5 // pred_check
        _
      $region70: #{tpu_custom_call.1} parent=5 // pred_check_branch
        %473 = sbr.rel (%p470) target = $region72
      $region71: #{tpu_custom_call.1} parent=5 // pred_region
        %s474 = ssub.s32 %s29, 1
        %s475 = sand.u32 %s42, 1
        %s476 = scalar_lea.sflag [#allocation3], %s475
        %s477 = sand.u32 %s42, 1
        %s478 = smul.addr %s477, 8
        %s479 = scalar_lea.vmem [#allocation2], %s478
        // Predicated region
        $region73: #{tpu_custom_call.1} parent=71 // pred_check
          %p480 = pneg %p55
        $region74: #{tpu_custom_call.1} parent=71 // pred_check_branch
          %482 = sbr.rel (%p480) target = $region76
        $region75: #{tpu_custom_call.1} parent=71 // pred_region
          %483 = dma.done %s476, 128
        $region76: #{tpu_custom_call.1} parent=71 // pred_fallthru
          _
        // Predicated region
        $region77: #{tpu_custom_call.1} parent=71 // pred_check
          %p484 = pneg %p118
        $region78: #{tpu_custom_call.1} parent=71 // pred_check_branch
          %486 = sbr.rel (%p484) target = $region80
        $region79: #{tpu_custom_call.1} parent=71 // pred_region
          %487 = dma.done [#allocation6], 512
        $region80: #{tpu_custom_call.1} parent=71 // pred_fallthru
          _
        // Predicated region
        $region81: #{tpu_custom_call.1} parent=71 // pred_check
          %p488 = pneg %p139
        $region82: #{tpu_custom_call.1} parent=71 // pred_check_branch
          %490 = sbr.rel (%p488) target = $region84
        $region83: #{tpu_custom_call.1} parent=71 // pred_region
          %491 = dma.done [#allocation6], 16
        $region84: #{tpu_custom_call.1} parent=71 // pred_fallthru
          _
        // Predicated region
        $region85: #{tpu_custom_call.1} parent=71 // pred_check
          %p492 = pneg %p160
        $region86: #{tpu_custom_call.1} parent=71 // pred_check_branch
          %494 = sbr.rel (%p492) target = $region88
        $region87: #{tpu_custom_call.1} parent=71 // pred_region
          %495 = dma.done [#allocation9], 512
        $region88: #{tpu_custom_call.1} parent=71 // pred_fallthru
          _
        // Predicated region
        $region89: #{tpu_custom_call.1} parent=71 // pred_check
          %p496 = pneg %p181
        $region90: #{tpu_custom_call.1} parent=71 // pred_check_branch
          %498 = sbr.rel (%p496) target = $region92
        $region91: #{tpu_custom_call.1} parent=71 // pred_region
          %499 = dma.done [#allocation9], 16
        $region92: #{tpu_custom_call.1} parent=71 // pred_fallthru
          _
        // Predicated region
        $region93: #{tpu_custom_call.1} parent=71 // pred_check
          %p500 = pneg %p202
        $region94: #{tpu_custom_call.1} parent=71 // pred_check_branch
          %502 = sbr.rel (%p500) target = $region96
        $region95: #{tpu_custom_call.1} parent=71 // pred_region
          %503 = dma.done [#allocation12], 16
        $region96: #{tpu_custom_call.1} parent=71 // pred_fallthru
          _
        // Predicated region
        $region97: #{tpu_custom_call.1} parent=71 // pred_check
          %p504 = pneg %p223
        $region98: #{tpu_custom_call.1} parent=71 // pred_check_branch
          %506 = sbr.rel (%p504) target = $region100
        $region99: #{tpu_custom_call.1} parent=71 // pred_region
          %507 = dma.done [#allocation12], 16
        $region100: #{tpu_custom_call.1} parent=71 // pred_fallthru
          _
        // Predicated region
        $region101: #{tpu_custom_call.1} parent=71 // pred_check
          %p508 = pneg %p286
        $region102: #{tpu_custom_call.1} parent=71 // pred_check_branch
          %510 = sbr.rel (%p508) target = $region104
        $region103: #{tpu_custom_call.1} parent=71 // pred_region
          %511 = dma.done [#allocation15], 512
        $region104: #{tpu_custom_call.1} parent=71 // pred_fallthru
          _
        %s512 = sand.u32 %s42, 1
        %s513 = scalar_lea.sflag [#allocation3], %s512
        %s514 = sand.u32 %s42, 1
        %s515 = smul.addr %s514, 8
        %s516 = scalar_lea.vmem [#allocation2], %s515
        %p517 = pneg %p55
        %p518 = pneg %p52
        %p519 = pneg %p76
        %p520 = pneg %p73
        %p521 = pneg %p97
        %p522 = pneg %p94
        %p523 = pneg %p118
        %p524 = pneg %p115
        %p525 = pneg %p139
        %p526 = pneg %p136
        %p527 = pneg %p160
        %p528 = pneg %p157
        %p529 = pneg %p181
        %p530 = pneg %p178
        %p531 = pneg %p202
        %p532 = pneg %p199
        %p533 = pneg %p223
        %p534 = pneg %p220
        %p535 = pneg %p244
        %p536 = pneg %p241
        %p537 = pneg %p265
        %p538 = pneg %p262
        %p539 = pneg %p286
        %p540 = pneg %p283
        %p541 = pneg %p307
        %p542 = pneg %p304
        %p543 = pneg %p333
        %p544 = pneg %p330
        %s545 = sand.u32 %s320, 1
        %s546 = scalar_lea.sflag [#allocation4], %s545
        %s547 = sand.u32 %s320, 1
        %s548 = smul.addr %s547, 8
        %s549 = scalar_lea.vmem [#allocation16], %s548
        %v550 = vld [vmem:[%s479] sm:$0xff]
        %v551 = vld [vmem:[%s1] sm:$0x1]
        %v552 = vld [vmem:[%s2] sm:$0x1]
        %vm553 = vcmask 261120
        %v554 = vsel %vm553, %v550, 0.0
        %555 = vadd.xlane.f32.xlu0 %v554
        %v556 = vpop.xlane.xlu0 %555
        %v557 = vrcp.pop 32.0
        %v558 = vmul.f32 %v556, %v557
        %v559 = vsub.f32 %v550, %v558
        %v560 = vmul.f32 %v559, %v559
        %v561 = vsel %vm553, %v560, 0.0
        %562 = vadd.xlane.f32.xlu0 %v561
        %v563 = vpop.xlane.xlu0 %562
        %v564 = vmul.f32 %v563, %v557
        %v565 = vadd.f32 %v564, 1e-05
        %v566 = vrsqrt.pop %v565
        %v567 = vmul.f32 %v559, %v566
        %v569 = vlaneseq
        %v570 = vshrl.u32 %v569, 7
        %v571 = vsub.s32 0, %v570
        %v572 = vrot.slane %v551, %v571
        %v574 = vmul.f32 %v567, %v572
        %v576 = vlaneseq
        %v577 = vshrl.u32 %v576, 7
        %v578 = vsub.s32 0, %v577
        %v579 = vrot.slane %v552, %v578
        %v581 = vadd.f32 %v574, %v579
        %v582 = vld [vmem:[#allocation5] sm:$0xff]
        %v583 = vld [vmem:[#allocation5 + $0x8] sm:$0xff]
        %v584 = vld [vmem:[#allocation5 + $0x10] sm:$0xff]
        %v585 = vld [vmem:[#allocation5 + $0x18] sm:$0xff]
        %v586 = vld [vmem:[#allocation7] sm:$0x1]
        %v588 = vlaneseq
        %v589 = vshrl.u32 %v588, 7
        %v590 = vsub.s32 0, %v589
        %v591 = vrot.slane %v586, %v590
        %v594 = vsel %vm553, %v581, 0
        %596 = vmatprep.subr.mxu0 0.0
        %597 = vmatpush1.msra.mxu0 %v582
        %598 = vmatprep.subr.mxu0 0.0
        %599 = vmatpush1.msra.mxu0 %v583
        %600 = vmatprep.subr.mxu0 0.0
        %601 = vmatpush1.msra.mxu0 %v584
        %602 = vmatprep.subr.mxu0 0.0
        %603 = vmatpush1.msra.mxu0 %v585
        %604 = vmatprep.subr.mxu0 0.0
        %605 = vmatpush1.msra.mxu0 0.0
        %606 = vmatprep.subr.mxu0 0.0
        %607 = vmatpush1.msra.mxu0 0.0
        %608 = vmatprep.subr.mxu0 0.0
        %609 = vmatpush1.msra.mxu0 0.0
        %610 = vmatprep.subr.mxu0 0.0
        %611 = vmatpush1.msra.mxu0 0.0
        %612 = vmatprep.subr.mxu0 0.0
        %613 = vmatpush1.msra.mxu0 0.0
        %614 = vmatprep.subr.mxu0 0.0
        %615 = vmatpush1.msra.mxu0 0.0
        %616 = vmatprep.subr.mxu0 0.0
        %617 = vmatpush1.msra.mxu0 0.0
        %618 = vmatprep.subr.mxu0 0.0
        %619 = vmatpush1.msra.mxu0 0.0
        %620 = vmatprep.subr.mxu0 0.0
        %621 = vmatpush1.msra.mxu0 0.0
        %622 = vmatprep.subr.mxu0 0.0
        %623 = vmatpush1.msra.mxu0 0.0
        %624 = vmatprep.subr.mxu0 0.0
        %625 = vmatpush1.msra.mxu0 0.0
        %626 = vmatprep.subr.mxu0 0.0
        %627 = vmatpush1.msra.mxu0 0.0
        %628 = vmatprep.subr.mxu0 0.0
        %629 = vmatpush1.msra.mxu0 0.0
        %630 = vmatprep.subr.mxu0 0.0
        %631 = vmatpush1.msra.mxu0 0.0
        %632 = vmatprep.subr.mxu0 0.0
        %633 = vmatpush1.msra.mxu0 0.0
        %634 = vmatprep.subr.mxu0 0.0
        %635 = vmatpush1.msra.mxu0 0.0
        %636 = vmatprep.subr.mxu0 0.0
        %637 = vmatpush1.msra.mxu0 0.0
        %638 = vmatprep.subr.mxu0 0.0
        %639 = vmatpush1.msra.mxu0 0.0
        %640 = vmatprep.subr.mxu0 0.0
        %641 = vmatpush1.msra.mxu0 0.0
        %642 = vmatprep.subr.mxu0 0.0
        %643 = vmatpush1.msra.mxu0 0.0
        %644 = vmatprep.subr.mxu0 0.0
        %645 = vmatpush1.msra.mxu0 0.0
        %646 = vmatprep.subr.mxu0 0.0
        %647 = vmatpush1.msra.mxu0 0.0
        %648 = vmatprep.subr.mxu0 0.0
        %649 = vmatpush1.msra.mxu0 0.0
        %650 = vmatprep.subr.mxu0 0.0
        %651 = vmatpush1.msra.mxu0 0.0
        %652 = vmatprep.subr.mxu0 0.0
        %653 = vmatpush1.msra.mxu0 0.0
        %654 = vmatprep.subr.mxu0 0.0
        %655 = vmatpush1.msra.mxu0 0.0
        %656 = vmatprep.subr.mxu0 0.0
        %657 = vmatpush1.msra.mxu0 0.0
        %658 = vmatprep.subr.mxu0 0.0
        %659 = vmatpush1.msra.mxu0 0.0
        %660 = vmatprep.mubr.f32.mxu0 0.0
        %661 = vmatmul.mubr.f32.gmra.mrb[0].mxu0 %v594
        %v662 = vpop.f32.mrb[0].mxu0
        %v663 = vadd.f32 %v591, %v662
        %v664 = vpop.f32.mrb[0].mxu0
        %665 = vdwg.mxu0
        %667 = vrot.lane.b32.xlu0 %v663, 96
        %v668 = vpop.permute.xlu0 %667
        %vm669 = vcmask 130048
        %v670 = vsel %vm669, %v663, 0
        %v672 = vsel %vm669, %v668, 0
        %674 = vmatprep.subr.mxu0 0.0
        %675 = vmatpush1.xpose.msra.mxu0 %v672
        %676 = vmatprep.subr.mxu0 0.0
        %677 = vmatpush1.xpose.msra.mxu0 0.0
        %678 = vmatprep.subr.mxu0 0.0
        %679 = vmatpush1.xpose.msra.mxu0 0.0
        %680 = vmatprep.subr.mxu0 0.0
        %681 = vmatpush1.xpose.msra.mxu0 0.0
        %682 = vmatprep.subr.mxu0 0.0
        %683 = vmatpush1.xpose.msra.mxu0 0.0
        %684 = vmatprep.subr.mxu0 0.0
        %685 = vmatpush1.xpose.msra.mxu0 0.0
        %686 = vmatprep.subr.mxu0 0.0
        %687 = vmatpush1.xpose.msra.mxu0 0.0
        %688 = vmatprep.subr.mxu0 0.0
        %689 = vmatpush1.xpose.msra.mxu0 0.0
        %690 = vmatprep.subr.mxu0 0.0
        %691 = vmatpush1.xpose.msra.mxu0 0.0
        %692 = vmatprep.subr.mxu0 0.0
        %693 = vmatpush1.xpose.msra.mxu0 0.0
        %694 = vmatprep.subr.mxu0 0.0
        %695 = vmatpush1.xpose.msra.mxu0 0.0
        %696 = vmatprep.subr.mxu0 0.0
        %697 = vmatpush1.xpose.msra.mxu0 0.0
        %698 = vmatprep.subr.mxu0 0.0
        %699 = vmatpush1.xpose.msra.mxu0 0.0
        %700 = vmatprep.subr.mxu0 0.0
        %701 = vmatpush1.xpose.msra.mxu0 0.0
        %702 = vmatprep.subr.mxu0 0.0
        %703 = vmatpush1.xpose.msra.mxu0 0.0
        %704 = vmatprep.subr.mxu0 0.0
        %705 = vmatpush1.xpose.msra.mxu0 0.0
        %706 = vmatprep.subr.mxu0 0.0
        %707 = vmatpush1.xpose.msra.mxu0 0.0
        %708 = vmatprep.subr.mxu0 0.0
        %709 = vmatpush1.xpose.msra.mxu0 0.0
        %710 = vmatprep.subr.mxu0 0.0
        %711 = vmatpush1.xpose.msra.mxu0 0.0
        %712 = vmatprep.subr.mxu0 0.0
        %713 = vmatpush1.xpose.msra.mxu0 0.0
        %714 = vmatprep.subr.mxu0 0.0
        %715 = vmatpush1.xpose.msra.mxu0 0.0
        %716 = vmatprep.subr.mxu0 0.0
        %717 = vmatpush1.xpose.msra.mxu0 0.0
        %718 = vmatprep.subr.mxu0 0.0
        %719 = vmatpush1.xpose.msra.mxu0 0.0
        %720 = vmatprep.subr.mxu0 0.0
        %721 = vmatpush1.xpose.msra.mxu0 0.0
        %722 = vmatprep.subr.mxu0 0.0
        %723 = vmatpush1.xpose.msra.mxu0 0.0
        %724 = vmatprep.subr.mxu0 0.0
        %725 = vmatpush1.xpose.msra.mxu0 0.0
        %726 = vmatprep.subr.mxu0 0.0
        %727 = vmatpush1.xpose.msra.mxu0 0.0
        %728 = vmatprep.subr.mxu0 0.0
        %729 = vmatpush1.xpose.msra.mxu0 0.0
        %730 = vmatprep.subr.mxu0 0.0
        %731 = vmatpush1.xpose.msra.mxu0 0.0
        %732 = vmatprep.subr.mxu0 0.0
        %733 = vmatpush1.xpose.msra.mxu0 0.0
        %734 = vmatprep.subr.mxu0 0.0
        %735 = vmatpush1.xpose.msra.mxu0 0.0
        %736 = vmatprep.subr.mxu0 0.0
        %737 = vmatpush1.xpose.msra.mxu0 0.0
        %738 = vmatprep.mubr.f32.mxu0 0.0
        %739 = vmatmul.mubr.f32.gmra.mrb[0].mxu0 %v670
        %v740 = vpop.f32.mrb[0].mxu0
        %v741 = vadd.f32 0.0, %v740
        %v742 = vpop.f32.mrb[0].mxu0
        %743 = vdwg.mxu0
        %v744 = vmul.f32 %v741, 0.25
        %vm745 = vcmask 64512
        %v746 = vsel %vm745, %v744, -inf
        %747 = vmax.xlane.f32.xlu0 %v746
        %v748 = vpop.xlane.xlu0 %747
        %v749 = vsub.f32 %v744, %v748
        %v750 = vmul.f32 %v749, 1.442695
        %v751 = vpow.pop %v750
        %v752 = vsel %vm745, %v751, 0.0
        %753 = vadd.xlane.f32.xlu0 %v752
        %v754 = vpop.xlane.xlu0 %753
        %v755 = vrcp.pop %v754
        %v756 = vmul.f32 %v751, %v755
        %757 = vrot.lane.b32.xlu0 %v663, 64
        %v758 = vpop.permute.xlu0 %757
        %v761 = vsel %vm745, %v756, 0
        %763 = vmatprep.subr.mxu0 0.0
        %764 = vmatpush1.msra.mxu0 %v758
        %765 = vmatprep.subr.mxu0 0.0
        %766 = vmatpush1.msra.mxu0 0.0
        %767 = vmatprep.subr.mxu0 0.0
        %768 = vmatpush1.msra.mxu0 0.0
        %769 = vmatprep.subr.mxu0 0.0
        %770 = vmatpush1.msra.mxu0 0.0
        %771 = vmatprep.subr.mxu0 0.0
        %772 = vmatpush1.msra.mxu0 0.0
        %773 = vmatprep.subr.mxu0 0.0
        %774 = vmatpush1.msra.mxu0 0.0
        %775 = vmatprep.subr.mxu0 0.0
        %776 = vmatpush1.msra.mxu0 0.0
        %777 = vmatprep.subr.mxu0 0.0
        %778 = vmatpush1.msra.mxu0 0.0
        %779 = vmatprep.subr.mxu0 0.0
        %780 = vmatpush1.msra.mxu0 0.0
        %781 = vmatprep.subr.mxu0 0.0
        %782 = vmatpush1.msra.mxu0 0.0
        %783 = vmatprep.subr.mxu0 0.0
        %784 = vmatpush1.msra.mxu0 0.0
        %785 = vmatprep.subr.mxu0 0.0
        %786 = vmatpush1.msra.mxu0 0.0
        %787 = vmatprep.subr.mxu0 0.0
        %788 = vmatpush1.msra.mxu0 0.0
        %789 = vmatprep.subr.mxu0 0.0
        %790 = vmatpush1.msra.mxu0 0.0
        %791 = vmatprep.subr.mxu0 0.0
        %792 = vmatpush1.msra.mxu0 0.0
        %793 = vmatprep.subr.mxu0 0.0
        %794 = vmatpush1.msra.mxu0 0.0
        %795 = vmatprep.subr.mxu0 0.0
        %796 = vmatpush1.msra.mxu0 0.0
        %797 = vmatprep.subr.mxu0 0.0
        %798 = vmatpush1.msra.mxu0 0.0
        %799 = vmatprep.subr.mxu0 0.0
        %800 = vmatpush1.msra.mxu0 0.0
        %801 = vmatprep.subr.mxu0 0.0
        %802 = vmatpush1.msra.mxu0 0.0
        %803 = vmatprep.subr.mxu0 0.0
        %804 = vmatpush1.msra.mxu0 0.0
        %805 = vmatprep.subr.mxu0 0.0
        %806 = vmatpush1.msra.mxu0 0.0
        %807 = vmatprep.subr.mxu0 0.0
        %808 = vmatpush1.msra.mxu0 0.0
        %809 = vmatprep.subr.mxu0 0.0
        %810 = vmatpush1.msra.mxu0 0.0
        %811 = vmatprep.subr.mxu0 0.0
        %812 = vmatpush1.msra.mxu0 0.0
        %813 = vmatprep.subr.mxu0 0.0
        %814 = vmatpush1.msra.mxu0 0.0
        %815 = vmatprep.subr.mxu0 0.0
        %816 = vmatpush1.msra.mxu0 0.0
        %817 = vmatprep.subr.mxu0 0.0
        %818 = vmatpush1.msra.mxu0 0.0
        %819 = vmatprep.subr.mxu0 0.0
        %820 = vmatpush1.msra.mxu0 0.0
        %821 = vmatprep.subr.mxu0 0.0
        %822 = vmatpush1.msra.mxu0 0.0
        %823 = vmatprep.subr.mxu0 0.0
        %824 = vmatpush1.msra.mxu0 0.0
        %825 = vmatprep.subr.mxu0 0.0
        %826 = vmatpush1.msra.mxu0 0.0
        %827 = vmatprep.mubr.f32.mxu0 0.0
        %828 = vmatmul.mubr.f32.gmra.mrb[0].mxu0 %v761
        %v829 = vpop.f32.mrb[0].mxu0
        %v830 = vadd.f32 0.0, %v829
        %v831 = vpop.f32.mrb[0].mxu0
        %832 = vdwg.mxu0
        %833 = vrot.lane.b32.xlu0 %v663, 112
        %v834 = vpop.permute.xlu0 %833
        %835 = vrot.lane.b32.xlu0 %v663, 80
        %v836 = vpop.permute.xlu0 %835
        %v837 = vsel %vm669, %v834, 0
        %v839 = vsel %vm669, %v836, 0
        %841 = vmatprep.subr.mxu0 0.0
        %842 = vmatpush1.xpose.msra.mxu0 %v839
        %843 = vmatprep.subr.mxu0 0.0
        %844 = vmatpush1.xpose.msra.mxu0 0.0
        %845 = vmatprep.subr.mxu0 0.0
        %846 = vmatpush1.xpose.msra.mxu0 0.0
        %847 = vmatprep.subr.mxu0 0.0
        %848 = vmatpush1.xpose.msra.mxu0 0.0
        %849 = vmatprep.subr.mxu0 0.0
        %850 = vmatpush1.xpose.msra.mxu0 0.0
        %851 = vmatprep.subr.mxu0 0.0
        %852 = vmatpush1.xpose.msra.mxu0 0.0
        %853 = vmatprep.subr.mxu0 0.0
        %854 = vmatpush1.xpose.msra.mxu0 0.0
        %855 = vmatprep.subr.mxu0 0.0
        %856 = vmatpush1.xpose.msra.mxu0 0.0
        %857 = vmatprep.subr.mxu0 0.0
        %858 = vmatpush1.xpose.msra.mxu0 0.0
        %859 = vmatprep.subr.mxu0 0.0
        %860 = vmatpush1.xpose.msra.mxu0 0.0
        %861 = vmatprep.subr.mxu0 0.0
        %862 = vmatpush1.xpose.msra.mxu0 0.0
        %863 = vmatprep.subr.mxu0 0.0
        %864 = vmatpush1.xpose.msra.mxu0 0.0
        %865 = vmatprep.subr.mxu0 0.0
        %866 = vmatpush1.xpose.msra.mxu0 0.0
        %867 = vmatprep.subr.mxu0 0.0
        %868 = vmatpush1.xpose.msra.mxu0 0.0
        %869 = vmatprep.subr.mxu0 0.0
        %870 = vmatpush1.xpose.msra.mxu0 0.0
        %871 = vmatprep.subr.mxu0 0.0
        %872 = vmatpush1.xpose.msra.mxu0 0.0
        %873 = vmatprep.subr.mxu0 0.0
        %874 = vmatpush1.xpose.msra.mxu0 0.0
        %875 = vmatprep.subr.mxu0 0.0
        %876 = vmatpush1.xpose.msra.mxu0 0.0
        %877 = vmatprep.subr.mxu0 0.0
        %878 = vmatpush1.xpose.msra.mxu0 0.0
        %879 = vmatprep.subr.mxu0 0.0
        %880 = vmatpush1.xpose.msra.mxu0 0.0
        %881 = vmatprep.subr.mxu0 0.0
        %882 = vmatpush1.xpose.msra.mxu0 0.0
        %883 = vmatprep.subr.mxu0 0.0
        %884 = vmatpush1.xpose.msra.mxu0 0.0
        %885 = vmatprep.subr.mxu0 0.0
        %886 = vmatpush1.xpose.msra.mxu0 0.0
        %887 = vmatprep.subr.mxu0 0.0
        %888 = vmatpush1.xpose.msra.mxu0 0.0
        %889 = vmatprep.subr.mxu0 0.0
        %890 = vmatpush1.xpose.msra.mxu0 0.0
        %891 = vmatprep.subr.mxu0 0.0
        %892 = vmatpush1.xpose.msra.mxu0 0.0
        %893 = vmatprep.subr.mxu0 0.0
        %894 = vmatpush1.xpose.msra.mxu0 0.0
        %895 = vmatprep.subr.mxu0 0.0
        %896 = vmatpush1.xpose.msra.mxu0 0.0
        %897 = vmatprep.subr.mxu0 0.0
        %898 = vmatpush1.xpose.msra.mxu0 0.0
        %899 = vmatprep.subr.mxu0 0.0
        %900 = vmatpush1.xpose.msra.mxu0 0.0
        %901 = vmatprep.subr.mxu0 0.0
        %902 = vmatpush1.xpose.msra.mxu0 0.0
        %903 = vmatprep.subr.mxu0 0.0
        %904 = vmatpush1.xpose.msra.mxu0 0.0
        %905 = vmatprep.mubr.f32.mxu0 0.0
        %906 = vmatmul.mubr.f32.gmra.mrb[0].mxu0 %v837
        %v907 = vpop.f32.mrb[0].mxu0
        %v908 = vadd.f32 0.0, %v907
        %v909 = vpop.f32.mrb[0].mxu0
        %910 = vdwg.mxu0
        %v911 = vmul.f32 %v908, 0.25
        %v912 = vsel %vm745, %v911, -inf
        %913 = vmax.xlane.f32.xlu0 %v912
        %v914 = vpop.xlane.xlu0 %913
        %v915 = vsub.f32 %v911, %v914
        %v916 = vmul.f32 %v915, 1.442695
        %v917 = vpow.pop %v916
        %v918 = vsel %vm745, %v917, 0.0
        %919 = vadd.xlane.f32.xlu0 %v918
        %v920 = vpop.xlane.xlu0 %919
        %v921 = vrcp.pop %v920
        %v922 = vmul.f32 %v917, %v921
        %923 = vrot.lane.b32.xlu0 %v663, 48
        %v924 = vpop.permute.xlu0 %923
        %v927 = vsel %vm745, %v922, 0
        %929 = vmatprep.subr.mxu0 0.0
        %930 = vmatpush1.msra.mxu0 %v924
        %931 = vmatprep.subr.mxu0 0.0
        %932 = vmatpush1.msra.mxu0 0.0
        %933 = vmatprep.subr.mxu0 0.0
        %934 = vmatpush1.msra.mxu0 0.0
        %935 = vmatprep.subr.mxu0 0.0
        %936 = vmatpush1.msra.mxu0 0.0
        %937 = vmatprep.subr.mxu0 0.0
        %938 = vmatpush1.msra.mxu0 0.0
        %939 = vmatprep.subr.mxu0 0.0
        %940 = vmatpush1.msra.mxu0 0.0
        %941 = vmatprep.subr.mxu0 0.0
        %942 = vmatpush1.msra.mxu0 0.0
        %943 = vmatprep.subr.mxu0 0.0
        %944 = vmatpush1.msra.mxu0 0.0
        %945 = vmatprep.subr.mxu0 0.0
        %946 = vmatpush1.msra.mxu0 0.0
        %947 = vmatprep.subr.mxu0 0.0
        %948 = vmatpush1.msra.mxu0 0.0
        %949 = vmatprep.subr.mxu0 0.0
        %950 = vmatpush1.msra.mxu0 0.0
        %951 = vmatprep.subr.mxu0 0.0
        %952 = vmatpush1.msra.mxu0 0.0
        %953 = vmatprep.subr.mxu0 0.0
        %954 = vmatpush1.msra.mxu0 0.0
        %955 = vmatprep.subr.mxu0 0.0
        %956 = vmatpush1.msra.mxu0 0.0
        %957 = vmatprep.subr.mxu0 0.0
        %958 = vmatpush1.msra.mxu0 0.0
        %959 = vmatprep.subr.mxu0 0.0
        %960 = vmatpush1.msra.mxu0 0.0
        %961 = vmatprep.subr.mxu0 0.0
        %962 = vmatpush1.msra.mxu0 0.0
        %963 = vmatprep.subr.mxu0 0.0
        %964 = vmatpush1.msra.mxu0 0.0
        %965 = vmatprep.subr.mxu0 0.0
        %966 = vmatpush1.msra.mxu0 0.0
        %967 = vmatprep.subr.mxu0 0.0
        %968 = vmatpush1.msra.mxu0 0.0
        %969 = vmatprep.subr.mxu0 0.0
        %970 = vmatpush1.msra.mxu0 0.0
        %971 = vmatprep.subr.mxu0 0.0
        %972 = vmatpush1.msra.mxu0 0.0
        %973 = vmatprep.subr.mxu0 0.0
        %974 = vmatpush1.msra.mxu0 0.0
        %975 = vmatprep.subr.mxu0 0.0
        %976 = vmatpush1.msra.mxu0 0.0
        %977 = vmatprep.subr.mxu0 0.0
        %978 = vmatpush1.msra.mxu0 0.0
        %979 = vmatprep.subr.mxu0 0.0
        %980 = vmatpush1.msra.mxu0 0.0
        %981 = vmatprep.subr.mxu0 0.0
        %982 = vmatpush1.msra.mxu0 0.0
        %983 = vmatprep.subr.mxu0 0.0
        %984 = vmatpush1.msra.mxu0 0.0
        %985 = vmatprep.subr.mxu0 0.0
        %986 = vmatpush1.msra.mxu0 0.0
        %987 = vmatprep.subr.mxu0 0.0
        %988 = vmatpush1.msra.mxu0 0.0
        %989 = vmatprep.subr.mxu0 0.0
        %990 = vmatpush1.msra.mxu0 0.0
        %991 = vmatprep.subr.mxu0 0.0
        %992 = vmatpush1.msra.mxu0 0.0
        %993 = vmatprep.mubr.f32.mxu0 0.0
        %994 = vmatmul.mubr.f32.gmra.mrb[0].mxu0 %v927
        %v995 = vpop.f32.mrb[0].mxu0
        %v996 = vadd.f32 0.0, %v995
        %v997 = vpop.f32.mrb[0].mxu0
        %998 = vdwg.mxu0
        %1000 = vrot.lane.b32.xlu0 %v996, 16
        %v1001 = vpop.permute.xlu0 %1000
        %v1003 = vsel %vm669, %v830, %v1001
        %v1004 = vld [vmem:[#allocation8] sm:$0xff]
        %v1005 = vld [vmem:[#allocation8 + $0x8] sm:$0xff]
        %v1006 = vld [vmem:[#allocation8 + $0x10] sm:$0xff]
        %v1007 = vld [vmem:[#allocation8 + $0x18] sm:$0xff]
        %v1008 = vld [vmem:[#allocation10] sm:$0x1]
        %v1010 = vlaneseq
        %v1011 = vshrl.u32 %v1010, 7
        %v1012 = vsub.s32 0, %v1011
        %v1013 = vrot.slane %v1008, %v1012
        %v1016 = vsel %vm553, %v1003, 0
        %1018 = vmatprep.subr.mxu0 0.0
        %1019 = vmatpush1.msra.mxu0 %v1004
        %1020 = vmatprep.subr.mxu0 0.0
        %1021 = vmatpush1.msra.mxu0 %v1005
        %1022 = vmatprep.subr.mxu0 0.0
        %1023 = vmatpush1.msra.mxu0 %v1006
        %1024 = vmatprep.subr.mxu0 0.0
        %1025 = vmatpush1.msra.mxu0 %v1007
        %1026 = vmatprep.subr.mxu0 0.0
        %1027 = vmatpush1.msra.mxu0 0.0
        %1028 = vmatprep.subr.mxu0 0.0
        %1029 = vmatpush1.msra.mxu0 0.0
        %1030 = vmatprep.subr.mxu0 0.0
        %1031 = vmatpush1.msra.mxu0 0.0
        %1032 = vmatprep.subr.mxu0 0.0
        %1033 = vmatpush1.msra.mxu0 0.0
        %1034 = vmatprep.subr.mxu0 0.0
        %1035 = vmatpush1.msra.mxu0 0.0
        %1036 = vmatprep.subr.mxu0 0.0
        %1037 = vmatpush1.msra.mxu0 0.0
        %1038 = vmatprep.subr.mxu0 0.0
        %1039 = vmatpush1.msra.mxu0 0.0
        %1040 = vmatprep.subr.mxu0 0.0
        %1041 = vmatpush1.msra.mxu0 0.0
        %1042 = vmatprep.subr.mxu0 0.0
        %1043 = vmatpush1.msra.mxu0 0.0
        %1044 = vmatprep.subr.mxu0 0.0
        %1045 = vmatpush1.msra.mxu0 0.0
        %1046 = vmatprep.subr.mxu0 0.0
        %1047 = vmatpush1.msra.mxu0 0.0
        %1048 = vmatprep.subr.mxu0 0.0
        %1049 = vmatpush1.msra.mxu0 0.0
        %1050 = vmatprep.subr.mxu0 0.0
        %1051 = vmatpush1.msra.mxu0 0.0
        %1052 = vmatprep.subr.mxu0 0.0
        %1053 = vmatpush1.msra.mxu0 0.0
        %1054 = vmatprep.subr.mxu0 0.0
        %1055 = vmatpush1.msra.mxu0 0.0
        %1056 = vmatprep.subr.mxu0 0.0
        %1057 = vmatpush1.msra.mxu0 0.0
        %1058 = vmatprep.subr.mxu0 0.0
        %1059 = vmatpush1.msra.mxu0 0.0
        %1060 = vmatprep.subr.mxu0 0.0
        %1061 = vmatpush1.msra.mxu0 0.0
        %1062 = vmatprep.subr.mxu0 0.0
        %1063 = vmatpush1.msra.mxu0 0.0
        %1064 = vmatprep.subr.mxu0 0.0
        %1065 = vmatpush1.msra.mxu0 0.0
        %1066 = vmatprep.subr.mxu0 0.0
        %1067 = vmatpush1.msra.mxu0 0.0
        %1068 = vmatprep.subr.mxu0 0.0
        %1069 = vmatpush1.msra.mxu0 0.0
        %1070 = vmatprep.subr.mxu0 0.0
        %1071 = vmatpush1.msra.mxu0 0.0
        %1072 = vmatprep.subr.mxu0 0.0
        %1073 = vmatpush1.msra.mxu0 0.0
        %1074 = vmatprep.subr.mxu0 0.0
        %1075 = vmatpush1.msra.mxu0 0.0
        %1076 = vmatprep.subr.mxu0 0.0
        %1077 = vmatpush1.msra.mxu0 0.0
        %1078 = vmatprep.subr.mxu0 0.0
        %1079 = vmatpush1.msra.mxu0 0.0
        %1080 = vmatprep.subr.mxu0 0.0
        %1081 = vmatpush1.msra.mxu0 0.0
        %1082 = vmatprep.mubr.f32.mxu0 0.0
        %1083 = vmatmul.mubr.f32.gmra.mrb[0].mxu0 %v1016
        %v1084 = vpop.f32.mrb[0].mxu0
        %v1085 = vadd.f32 %v1013, %v1084
        %v1086 = vpop.f32.mrb[0].mxu0
        %1087 = vdwg.mxu0
        %v1088 = vadd.f32 %v1085, %v581
        %v1089 = vld [vmem:[#allocation11] sm:$0x1]
        %v1090 = vld [vmem:[#allocation13] sm:$0x1]
        %v1091 = vsel %vm553, %v1088, 0.0
        %1092 = vadd.xlane.f32.xlu0 %v1091
        %v1093 = vpop.xlane.xlu0 %1092
        %v1094 = vmul.f32 %v1093, %v557
        %v1095 = vsub.f32 %v1088, %v1094
        %v1096 = vmul.f32 %v1095, %v1095
        %v1097 = vsel %vm553, %v1096, 0.0
        %1098 = vadd.xlane.f32.xlu0 %v1097
        %v1099 = vpop.xlane.xlu0 %1098
        %v1100 = vmul.f32 %v1099, %v557
        %v1101 = vadd.f32 %v1100, 1e-05
        %v1102 = vrsqrt.pop %v1101
        %v1103 = vmul.f32 %v1095, %v1102
        %v1105 = vlaneseq
        %v1106 = vshrl.u32 %v1105, 7
        %v1107 = vsub.s32 0, %v1106
        %v1108 = vrot.slane %v1089, %v1107
        %v1110 = vmul.f32 %v1103, %v1108
        %v1112 = vlaneseq
        %v1113 = vshrl.u32 %v1112, 7
        %v1114 = vsub.s32 0, %v1113
        %v1115 = vrot.slane %v1090, %v1114
        %v1117 = vadd.f32 %v1110, %v1115
        %v1118 = vld [vmem:[%s9] sm:$0xff]
        %v1119 = vld [vmem:[%s9 + $0x8] sm:$0xff]
        %v1120 = vld [vmem:[%s9 + $0x10] sm:$0xff]
        %v1121 = vld [vmem:[%s9 + $0x18] sm:$0xff]
        %v1122 = vld [vmem:[%s10] sm:$0x1]
        %v1124 = vlaneseq
        %v1125 = vshrl.u32 %v1124, 7
        %v1126 = vsub.s32 0, %v1125
        %v1127 = vrot.slane %v1122, %v1126
        %v1130 = vsel %vm553, %v1117, 0
        %1132 = vmatprep.subr.mxu0 0.0
        %1133 = vmatpush1.msra.mxu0 %v1118
        %1134 = vmatprep.subr.mxu0 0.0
        %1135 = vmatpush1.msra.mxu0 %v1119
        %1136 = vmatprep.subr.mxu0 0.0
        %1137 = vmatpush1.msra.mxu0 %v1120
        %1138 = vmatprep.subr.mxu0 0.0
        %1139 = vmatpush1.msra.mxu0 %v1121
        %1140 = vmatprep.subr.mxu0 0.0
        %1141 = vmatpush1.msra.mxu0 0.0
        %1142 = vmatprep.subr.mxu0 0.0
        %1143 = vmatpush1.msra.mxu0 0.0
        %1144 = vmatprep.subr.mxu0 0.0
        %1145 = vmatpush1.msra.mxu0 0.0
        %1146 = vmatprep.subr.mxu0 0.0
        %1147 = vmatpush1.msra.mxu0 0.0
        %1148 = vmatprep.subr.mxu0 0.0
        %1149 = vmatpush1.msra.mxu0 0.0
        %1150 = vmatprep.subr.mxu0 0.0
        %1151 = vmatpush1.msra.mxu0 0.0
        %1152 = vmatprep.subr.mxu0 0.0
        %1153 = vmatpush1.msra.mxu0 0.0
        %1154 = vmatprep.subr.mxu0 0.0
        %1155 = vmatpush1.msra.mxu0 0.0
        %1156 = vmatprep.subr.mxu0 0.0
        %1157 = vmatpush1.msra.mxu0 0.0
        %1158 = vmatprep.subr.mxu0 0.0
        %1159 = vmatpush1.msra.mxu0 0.0
        %1160 = vmatprep.subr.mxu0 0.0
        %1161 = vmatpush1.msra.mxu0 0.0
        %1162 = vmatprep.subr.mxu0 0.0
        %1163 = vmatpush1.msra.mxu0 0.0
        %1164 = vmatprep.subr.mxu0 0.0
        %1165 = vmatpush1.msra.mxu0 0.0
        %1166 = vmatprep.subr.mxu0 0.0
        %1167 = vmatpush1.msra.mxu0 0.0
        %1168 = vmatprep.subr.mxu0 0.0
        %1169 = vmatpush1.msra.mxu0 0.0
        %1170 = vmatprep.subr.mxu0 0.0
        %1171 = vmatpush1.msra.mxu0 0.0
        %1172 = vmatprep.subr.mxu0 0.0
        %1173 = vmatpush1.msra.mxu0 0.0
        %1174 = vmatprep.subr.mxu0 0.0
        %1175 = vmatpush1.msra.mxu0 0.0
        %1176 = vmatprep.subr.mxu0 0.0
        %1177 = vmatpush1.msra.mxu0 0.0
        %1178 = vmatprep.subr.mxu0 0.0
        %1179 = vmatpush1.msra.mxu0 0.0
        %1180 = vmatprep.subr.mxu0 0.0
        %1181 = vmatpush1.msra.mxu0 0.0
        %1182 = vmatprep.subr.mxu0 0.0
        %1183 = vmatpush1.msra.mxu0 0.0
        %1184 = vmatprep.subr.mxu0 0.0
        %1185 = vmatpush1.msra.mxu0 0.0
        %1186 = vmatprep.subr.mxu0 0.0
        %1187 = vmatpush1.msra.mxu0 0.0
        %1188 = vmatprep.subr.mxu0 0.0
        %1189 = vmatpush1.msra.mxu0 0.0
        %1190 = vmatprep.subr.mxu0 0.0
        %1191 = vmatpush1.msra.mxu0 0.0
        %1192 = vmatprep.subr.mxu0 0.0
        %1193 = vmatpush1.msra.mxu0 0.0
        %1194 = vmatprep.subr.mxu0 0.0
        %1195 = vmatpush1.msra.mxu0 0.0
        %1196 = vmatprep.mubr.f32.mxu0 0.0
        %1197 = vmatmul.mubr.f32.gmra.mrb[0].mxu0 %v1130
        %v1198 = vpop.f32.mrb[0].mxu0
        %v1199 = vadd.f32 %v1127, %v1198
        %v1200 = vpop.f32.mrb[0].mxu0
        %1201 = vdwg.mxu0
        %v1202 = vmul.f32 %v1199, 0.5
        %v1203 = vmul.f32 %v1199, 0.70710677
        %v1204 = vand.u32 2147483647, %v1203
        %v1205 = vmul.f32 %v1204, 0.3275911
        %v1206 = vadd.f32 %v1205, 1.0
        %v1207 = vrcp.pop %v1206
        %v1208 = vmul.f32 1.0, %v1207
        %v1209 = vmul.f32 %v1208, 1.0614054
        %v1210 = vadd.f32 %v1209, -1.4531521
        %v1211 = vmul.f32 %v1210, %v1208
        %v1212 = vadd.f32 %v1211, 1.4214138
        %v1213 = vmul.f32 %v1212, %v1208
        %v1214 = vadd.f32 %v1213, -0.28449672
        %v1215 = vmul.f32 %v1214, %v1208
        %v1216 = vadd.f32 %v1215, 0.2548296
        %v1217 = vmul.f32 %v1216, %v1208
        %v1218 = vsub.f32 0.0, %v1204
        %v1219 = vmul.f32 %v1218, %v1204
        %v1220 = vmul.f32 %v1219, 1.442695
        %v1221 = vpow.pop %v1220
        %v1222 = vmul.f32 %v1217, %v1221
        %v1223 = vsub.f32 1.0, %v1222
        %vm1224 = vcmp.ge.f32.partialorder %v1203, 0.0
        %v1225 = vsub.f32 0.0, %v1223
        %v1226 = vsel %vm1224, %v1223, %v1225
        %v1227 = vadd.f32 %v1226, 1.0
        %v1228 = vmul.f32 %v1202, %v1227
        %v1229 = vld [vmem:[#allocation14] sm:$0xff]
        %v1230 = vld [vmem:[#allocation14 + $0x8] sm:$0xff]
        %v1231 = vld [vmem:[#allocation14 + $0x10] sm:$0xff]
        %v1232 = vld [vmem:[#allocation14 + $0x18] sm:$0xff]
        %v1233 = vld [vmem:[%s12] sm:$0x1]
        %v1235 = vlaneseq
        %v1236 = vshrl.u32 %v1235, 7
        %v1237 = vsub.s32 0, %v1236
        %v1238 = vrot.slane %v1233, %v1237
        %v1241 = vsel %vm553, %v1228, 0
        %1243 = vmatprep.subr.mxu0 0.0
        %1244 = vmatpush1.msra.mxu0 %v1229
        %1245 = vmatprep.subr.mxu0 0.0
        %1246 = vmatpush1.msra.mxu0 %v1230
        %1247 = vmatprep.subr.mxu0 0.0
        %1248 = vmatpush1.msra.mxu0 %v1231
        %1249 = vmatprep.subr.mxu0 0.0
        %1250 = vmatpush1.msra.mxu0 %v1232
        %1251 = vmatprep.subr.mxu0 0.0
        %1252 = vmatpush1.msra.mxu0 0.0
        %1253 = vmatprep.subr.mxu0 0.0
        %1254 = vmatpush1.msra.mxu0 0.0
        %1255 = vmatprep.subr.mxu0 0.0
        %1256 = vmatpush1.msra.mxu0 0.0
        %1257 = vmatprep.subr.mxu0 0.0
        %1258 = vmatpush1.msra.mxu0 0.0
        %1259 = vmatprep.subr.mxu0 0.0
        %1260 = vmatpush1.msra.mxu0 0.0
        %1261 = vmatprep.subr.mxu0 0.0
        %1262 = vmatpush1.msra.mxu0 0.0
        %1263 = vmatprep.subr.mxu0 0.0
        %1264 = vmatpush1.msra.mxu0 0.0
        %1265 = vmatprep.subr.mxu0 0.0
        %1266 = vmatpush1.msra.mxu0 0.0
        %1267 = vmatprep.subr.mxu0 0.0
        %1268 = vmatpush1.msra.mxu0 0.0
        %1269 = vmatprep.subr.mxu0 0.0
        %1270 = vmatpush1.msra.mxu0 0.0
        %1271 = vmatprep.subr.mxu0 0.0
        %1272 = vmatpush1.msra.mxu0 0.0
        %1273 = vmatprep.subr.mxu0 0.0
        %1274 = vmatpush1.msra.mxu0 0.0
        %1275 = vmatprep.subr.mxu0 0.0
        %1276 = vmatpush1.msra.mxu0 0.0
        %1277 = vmatprep.subr.mxu0 0.0
        %1278 = vmatpush1.msra.mxu0 0.0
        %1279 = vmatprep.subr.mxu0 0.0
        %1280 = vmatpush1.msra.mxu0 0.0
        %1281 = vmatprep.subr.mxu0 0.0
        %1282 = vmatpush1.msra.mxu0 0.0
        %1283 = vmatprep.subr.mxu0 0.0
        %1284 = vmatpush1.msra.mxu0 0.0
        %1285 = vmatprep.subr.mxu0 0.0
        %1286 = vmatpush1.msra.mxu0 0.0
        %1287 = vmatprep.subr.mxu0 0.0
        %1288 = vmatpush1.msra.mxu0 0.0
        %1289 = vmatprep.subr.mxu0 0.0
        %1290 = vmatpush1.msra.mxu0 0.0
        %1291 = vmatprep.subr.mxu0 0.0
        %1292 = vmatpush1.msra.mxu0 0.0
        %1293 = vmatprep.subr.mxu0 0.0
        %1294 = vmatpush1.msra.mxu0 0.0
        %1295 = vmatprep.subr.mxu0 0.0
        %1296 = vmatpush1.msra.mxu0 0.0
        %1297 = vmatprep.subr.mxu0 0.0
        %1298 = vmatpush1.msra.mxu0 0.0
        %1299 = vmatprep.subr.mxu0 0.0
        %1300 = vmatpush1.msra.mxu0 0.0
        %1301 = vmatprep.subr.mxu0 0.0
        %1302 = vmatpush1.msra.mxu0 0.0
        %1303 = vmatprep.subr.mxu0 0.0
        %1304 = vmatpush1.msra.mxu0 0.0
        %1305 = vmatprep.subr.mxu0 0.0
        %1306 = vmatpush1.msra.mxu0 0.0
        %1307 = vmatprep.mubr.f32.mxu0 0.0
        %1308 = vmatmul.mubr.f32.gmra.mrb[0].mxu0 %v1241
        %v1309 = vpop.f32.mrb[0].mxu0
        %v1310 = vadd.f32 %v1238, %v1309
        %v1311 = vpop.f32.mrb[0].mxu0
        %1312 = vdwg.mxu0
        %v1313 = vmul.f32 %v1310, 0.5
        %v1314 = vmul.f32 %v1310, 0.70710677
        %v1315 = vand.u32 2147483647, %v1314
        %v1316 = vmul.f32 %v1315, 0.3275911
        %v1317 = vadd.f32 %v1316, 1.0
        %v1318 = vrcp.pop %v1317
        %v1319 = vmul.f32 1.0, %v1318
        %v1320 = vmul.f32 %v1319, 1.0614054
        %v1321 = vadd.f32 %v1320, -1.4531521
        %v1322 = vmul.f32 %v1321, %v1319
        %v1323 = vadd.f32 %v1322, 1.4214138
        %v1324 = vmul.f32 %v1323, %v1319
        %v1325 = vadd.f32 %v1324, -0.28449672
        %v1326 = vmul.f32 %v1325, %v1319
        %v1327 = vadd.f32 %v1326, 0.2548296
        %v1328 = vmul.f32 %v1327, %v1319
        %v1329 = vsub.f32 0.0, %v1315
        %v1330 = vmul.f32 %v1329, %v1315
        %v1331 = vmul.f32 %v1330, 1.442695
        %v1332 = vpow.pop %v1331
        %v1333 = vmul.f32 %v1328, %v1332
        %v1334 = vsub.f32 1.0, %v1333
        %vm1335 = vcmp.ge.f32.partialorder %v1314, 0.0
        %v1336 = vsub.f32 0.0, %v1334
        %v1337 = vsel %vm1335, %v1334, %v1336
        %v1338 = vadd.f32 %v1337, 1.0
        %v1339 = vmul.f32 %v1313, %v1338
        %v1340 = vadd.f32 %v1339, %v1088
        %1341 = vst.msk [vmem:[%s549] sm:$0xff] %vm553, %v1340
        %s1342 = sand.u32 %s320, 1
        %s1343 = scalar_lea.sflag [#allocation4], %s1342
        %s1344 = sand.u32 %s320, 1
        %s1345 = smul.addr %s1344, 8
        %s1346 = scalar_lea.vmem [#allocation16], %s1345
        // Predicated region
        $region105: #{tpu_custom_call.1} parent=71 // pred_check
          %p1347 = pneg %p330
        $region106: #{tpu_custom_call.1} parent=71 // pred_check_branch
          %1349 = sbr.rel (%p1347) target = $region108
        $region107: #{tpu_custom_call.1} parent=71 // pred_region
          %s1351 = ssub.s32 128, 128
          %1352 = vsyncadd %s1343, %s1351
          %s1353 = smul.addr %s34, 128
          %s1354 = scalar_lea.hbm %s13, %s1353
          %s1356 = sshll.u32 %s1346, 4
          %s1357 = int_to_ptr.vmem [resolvable:$true] %s1356
          %1359 = dma.vmem_to_hbm [thread:$0]  %s1357, 128, %s1354, %s1343
        $region108: #{tpu_custom_call.1} parent=71 // pred_fallthru
          _
      $region72: #{tpu_custom_call.1} parent=5 // pred_fallthru
        _
      %p1360 = scmp.le.s32.totalorder 2, %s29
      // Predicated region
      $region109: #{tpu_custom_call.1} parent=5 // pred_check
        %p1361 = pneg %p1360
      $region110: #{tpu_custom_call.1} parent=5 // pred_check_branch
        %1363 = sbr.rel (%p1361) target = $region112
      $region111: #{tpu_custom_call.1} parent=5 // pred_region
        %s1364 = ssub.s32 %s29, 2
        // Predicated region
        $region113: #{tpu_custom_call.1} parent=111 // pred_check
          %p1365 = pneg %p336
        $region114: #{tpu_custom_call.1} parent=111 // pred_check_branch
          %1367 = sbr.rel (%p1365) target = $region116
        $region115: #{tpu_custom_call.1} parent=111 // pred_region
          %s1368 = sand.u32 %s321, 1
          %s1369 = scalar_lea.sflag [#allocation4], %s1368
          %s1370 = sand.u32 %s321, 1
          %s1371 = smul.addr %s1370, 8
          %s1372 = scalar_lea.vmem [#allocation16], %s1371
          %1373 = dma.done %s1369, 128
        $region116: #{tpu_custom_call.1} parent=111 // pred_fallthru
          _
      $region112: #{tpu_custom_call.1} parent=5 // pred_fallthru
        _
    $region6: #{tpu_custom_call.1} parent=1 // loop_footer
      %s33 = sadd.s32 1, %s29
    $region7: #{tpu_custom_call.1} parent=1 // loop_footer_branch
      %28 = sbr.rel target = $region3
    $region8: #{tpu_custom_call.1} parent=1 // loop_exit
      _
    %1374 = vsyncpa [#allocation3], 1
    %s1375 = scalar_lea.sflag [#allocation3], 1
    %1376 = vsyncpa %s1375, 1
    %1377 = vsyncpa [#allocation6], 1
    %1378 = vsyncpa [#allocation9], 1
    %1379 = vsyncpa [#allocation12], 1
    %1380 = vsyncpa [#allocation15], 1
    %1381 = vsyncpa [#allocation4], 1
    %s1382 = scalar_lea.sflag [#allocation4], 1
    %1383 = vsyncpa %s1382, 1

</llo_original>
